<compile_context>
chip_gen: v7x
topology: tpu7x:2x2x1
jax: 0.10.0
libtpu: 0.0.40
codegen_flags: <defaults>
</compile_context>

<pallas_src>
import functools

import numpy as np
import jax
import jax.numpy as jnp
from jax.experimental import pallas as pl
from jax.experimental.pallas import tpu as pltpu


# ----------------------------------------------------------------------------
# Kernel
# ----------------------------------------------------------------------------
def _inverted_block_kernel(x_ref, w1_ref, b1_ref, taps_ref, b2_ref, w3_ref,
                           masks_ref, o_ref, *, W):
    """One grid step: nb images, each as a (Cs, M) lane-dense slab (M = H*W)."""
    nb = x_ref.shape[0]
    M = x_ref.shape[2]
    ew = taps_ref.dtype                      # elementwise dtype (bf16 or f32)

    w1 = w1_ref[...]                         # (Ce, Cs) bf16, BN1 scale folded
    w3 = w3_ref[...]                         # (Cs, Ce) bf16
    b1 = b1_ref[...]                         # (Ce, 1)  f32
    taps = taps_ref[...]                     # (Ce, 9)  ew, BN2 scale folded
    b2 = b2_ref[...]                         # (Ce, 1)  ew
    cl = masks_ref[0:1, :]                   # (1, M) ew : col >= 1   (left ok)
    cr = masks_ref[1:2, :]                   #            col <= W-2  (right ok)
    ru = masks_ref[2:3, :]                   #            row >= 1    (up ok)
    rd = masks_ref[3:4, :]                   #            row <= H-2  (down ok)

    for i in range(nb):                      # unrolled; nb is small & static
        x_i = x_ref[i]                                                # (Cs, M) f32

        # ---- 1x1 squeeze->expand (BN1 folded) + bias + ReLU6 -------------
        h1 = jnp.dot(w1, x_i.astype(jnp.bfloat16),
                     preferred_element_type=jnp.float32)              # (Ce, M)
        h1 = jnp.clip(h1 + b1, 0.0, 6.0).astype(ew)

        # ---- 3x3 depthwise, pad=1 (BN2 folded) ----------------------------
        # Horizontal neighbours: 2 lane rolls + 2 column-mask muls.
        x_l = pltpu.roll(h1, 1, 1) * cl          # in[p-1], zero at col 0
        x_r = pltpu.roll(h1, M - 1, 1) * cr      # in[p+1], zero at col W-1

        # Per-row partial sums (taps j = (dh+1)*3 + (dw+1)).
        r_u = taps[:, 0:1] * x_l + taps[:, 1:2] * h1 + taps[:, 2:3] * x_r
        r_m = taps[:, 3:4] * x_l + taps[:, 4:5] * h1 + taps[:, 5:6] * x_r
        r_d = taps[:, 6:7] * x_l + taps[:, 7:8] * h1 + taps[:, 8:9] * x_r

        # Vertical shifts: 2 rolls + 2 row-mask muls; col masks are invariant
        # under shifts by multiples of W.  b2 folded into the accumulation.
        acc = (b2 + r_m
               + ru * pltpu.roll(r_u, W, 1)
               + rd * pltpu.roll(r_d, M - W, 1))
        h2 = jnp.clip(acc, 0.0, 6.0)

        # ---- 1x1 expand->squeeze + residual -------------------------------
        h3 = jnp.dot(w3, h2.astype(jnp.bfloat16),
                     preferred_element_type=jnp.float32)              # (Cs, M)
        o_ref[i] = x_i + h3


# ----------------------------------------------------------------------------
# Host-side helpers
# ----------------------------------------------------------------------------
def _device_kind():
    try:
        return jax.devices()[0].device_kind.lower()
    except Exception:
        return ""


def _make_masks(H, W, dtype):
    """(4, H*W) multiplicative boundary masks: [col>=1, col<=W-2, row>=1, row<=H-2]."""
    idx = np.arange(H * W)
    col = idx % W
    row = idx // W
    m = np.stack([col >= 1, col <= W - 2, row >= 1, row <= H - 2]).astype(np.float32)
    return jnp.asarray(m, dtype=dtype)


def _pick_images_per_step(N, Cs, Ce, M, ew_bytes, need_two_steps, vmem_budget):
    """Largest nb dividing N that fits the VMEM budget; keep >=2 grid steps
    only where it buys TensorCore sharding (v7x)."""
    best = 1
    for nb in range(1, N + 1):
        if N % nb:
            continue
        if need_two_steps and N >= 2 and N // nb < 2:
            continue
        live = nb * (4 * Cs * M * 4 + 6 * Ce * M * ew_bytes)   # x/out dbl-buf + temps
        if nb > 1 and live > vmem_budget:
            continue
        best = nb
    return best


def fold_params(w1, g1, be1, m1, v1, wdw, g2, be2, m2, v2, w3,
                eps=1e-5, ew_dtype=jnp.float32):
    """One-time host-side fold of eval-mode BatchNorm into the conv weights.
      w1  <-> conv1.weight[:, :, 0, 0]   (Ce, Cs)
      wdw <-> dwconv.weight[:, 0]        (Ce, 3, 3)
      w3  <-> conv3.weight[:, :, 0, 0]   (Cs, Ce)
    """
    Ce = w1.shape[0]
    s1 = g1 / jnp.sqrt(v1 + eps)
    s2 = g2 / jnp.sqrt(v2 + eps)
    w1f = (w1 * s1[:, None]).astype(jnp.bfloat16)            # MXU operand
    b1 = (be1 - m1 * s1)[:, None].astype(jnp.float32)        # added to f32 MXU out
    taps = (wdw.reshape(Ce, 9) * s2[:, None]).astype(ew_dtype)
    b2 = (be2 - m2 * s2)[:, None].astype(ew_dtype)
    w3b = w3.astype(jnp.bfloat16)                            # MXU operand
    return w1f, b1, taps, b2, w3b


def inverted_block(x_nchw, w1f, b1, tapsf, b2, w3b):
    """x_nchw: (N, Cs, H, W) float32; params from fold_params()."""
    N, Cs, H, W = x_nchw.shape
    Ce = w1f.shape[0]
    M = H * W
    ew_dtype = tapsf.dtype
    ew_bytes = jnp.dtype(ew_dtype).itemsize

    kind = _device_kind()
    is_v7 = ("v7" in kind) or ("7x" in kind)
    cap = (40 << 20) if is_v7 else (96 << 20)       # gen-aware VMEM ceiling

    nb = _pick_images_per_step(N, Cs, Ce, M, ew_bytes,
                               need_two_steps=is_v7, vmem_budget=cap // 2)

    # NCHW is already channel-major per image: only free contiguous reshapes.
    x3 = x_nchw.reshape(N, Cs, M)
    masks = _make_masks(H, W, ew_dtype)             # grid-invariant, stays resident

    grid = (N // nb,)
    const = lambda i: (0, 0)
    grid_spec = pltpu.PrefetchScalarGridSpec(
        num_scalar_prefetch=0,
        grid=grid,
        in_specs=[
            pl.BlockSpec((nb, Cs, M), lambda i: (i, 0, 0)),   # x, NCHW-native block
            pl.BlockSpec((Ce, Cs), const),                    # w1 (bf16, BN1 folded)
            pl.BlockSpec((Ce, 1), const),                     # b1 (f32)
            pl.BlockSpec((Ce, 9), const),                     # dw taps (BN2 folded)
            pl.BlockSpec((Ce, 1), const),                     # b2
            pl.BlockSpec((Cs, Ce), const),                    # w3 (bf16)
            pl.BlockSpec((4, M), const),                      # boundary masks
        ],
        out_specs=pl.BlockSpec((nb, Cs, M), lambda i: (i, 0, 0)),
    )

    live = nb * (4 * Cs * M * 4 + 6 * Ce * M * ew_bytes)
    vmem_limit = int(min(cap, max(32 << 20, 2 * live)))

    flops = 2 * N * M * Ce * (2 * Cs + 9) + 8 * N * M * Ce
    bytes_accessed = (2 * N * Cs * M * 4 + (w1f.size + w3b.size) * 2
                      + (tapsf.size + b2.size + masks.size) * ew_bytes + b1.size * 4)

    out3 = pl.pallas_call(
        functools.partial(_inverted_block_kernel, W=W),
        out_shape=jax.ShapeDtypeStruct((N, Cs, M), jnp.float32),
        grid_spec=grid_spec,
        compiler_params=pltpu.CompilerParams(
            dimension_semantics=("parallel",),
            vmem_limit_bytes=vmem_limit),
        cost_estimate=pl.CostEstimate(flops=int(flops), transcendentals=0,
                                      bytes_accessed=int(bytes_accessed)),
    )(x3, w1f, b1, tapsf, b2, w3b, masks)

    return out3.reshape(N, Cs, H, W)


# ----------------------------------------------------------------------------
# References
# ----------------------------------------------------------------------------
def ref_forward(x, w1, g1, be1, m1, v1, wdw, g2, be2, m2, v2, w3, eps=1e-5):
    """Pure-JAX f32 reference of the PyTorch module (eval-mode BatchNorm)."""
    N, Cs, H, W = x.shape

    def bn(h, g, b, m, v):
        s = g / jnp.sqrt(v + eps)
        return h * s[None, :, None, None] + (b - m * s)[None, :, None, None]

    h = jnp.einsum('nchw,ec->nehw', x, w1)
    h = jnp.clip(bn(h, g1, be1, m1, v1), 0.0, 6.0)
    hp = jnp.pad(h, ((0, 0), (0, 0), (1, 1), (1, 1)))
    acc = jnp.zeros_like(h)
    for dh in range(3):
        for dw in range(3):
            acc = acc + hp[:, :, dh:dh + H, dw:dw + W] * wdw[None, :, dh, dw, None, None]
    h2 = jnp.clip(bn(acc, g2, be2, m2, v2), 0.0, 6.0)
    h3 = jnp.einsum('nehw,ce->nchw', h2, w3)
    return x + h3


def ref_forward_mimic(x, w1f, b1, tapsf, b2, w3b):
    """Transliteration of the kernel math (folded BN, bf16 MXU operands, same
    roll/mask regrouping and elementwise dtype) for a tight validation."""
    N, Cs, H, W = x.shape
    M = H * W
    ew = tapsf.dtype
    masks = _make_masks(H, W, ew)
    cl, cr, ru, rd = (masks[k:k + 1, :] for k in range(4))
    xm = x.reshape(N, Cs, M)
    outs = []
    for i in range(N):
        xi = xm[i]
        h1 = jnp.dot(w1f, xi.astype(jnp.bfloat16), preferred_element_type=jnp.float32)
        h1 = jnp.clip(h1 + b1, 0.0, 6.0).astype(ew)
        x_l = jnp.roll(h1, 1, axis=1) * cl
        x_r = jnp.roll(h1, -1, axis=1) * cr
        r_u = tapsf[:, 0:1] * x_l + tapsf[:, 1:2] * h1 + tapsf[:, 2:3] * x_r
        r_m = tapsf[:, 3:4] * x_l + tapsf[:, 4:5] * h1 + tapsf[:, 5:6] * x_r
        r_d = tapsf[:, 6:7] * x_l + tapsf[:, 7:8] * h1 + tapsf[:, 8:9] * x_r
        acc = b2 + r_m + ru * jnp.roll(r_u, W, axis=1) + rd * jnp.roll(r_d, -W, axis=1)
        h2 = jnp.clip(acc, 0.0, 6.0)
        h3 = jnp.dot(w3b, h2.astype(jnp.bfloat16), preferred_element_type=jnp.float32)
        outs.append(xi + h3)
    return jnp.stack(outs).reshape(N, Cs, H, W)


# ----------------------------------------------------------------------------
# Main
# ----------------------------------------------------------------------------
if __name__ == "__main__":
    squeeze, expand = 16, 64
    N, H, W = 2, 16, 16

    key = jax.random.PRNGKey(0)
    ks = jax.random.split(key, 12)

    # NCHW input, matching the PyTorch module.
    x = jax.random.normal(ks[0], (N, squeeze, H, W), jnp.float32)

    # Conv weights in native PyTorch layouts.
    w1 = 0.1 * jax.random.normal(ks[1], (expand, squeeze), jnp.float32)
    wdw = 0.1 * jax.random.normal(ks[2], (expand, 3, 3), jnp.float32)
    w3 = 0.1 * jax.random.normal(ks[3], (squeeze, expand), jnp.float32)

    # BatchNorm parameters (inference form / running stats).
    g1 = 1.0 + 0.1 * jax.random.normal(ks[4], (expand,), jnp.float32)
    be1 = 0.1 * jax.random.normal(ks[5], (expand,), jnp.float32)
    m1 = 0.1 * jax.random.normal(ks[6], (expand,), jnp.float32)
    v1 = jnp.abs(1.0 + 0.1 * jax.random.normal(ks[7], (expand,), jnp.float32))
    g2 = 1.0 + 0.1 * jax.random.normal(ks[8], (expand,), jnp.float32)
    be2 = 0.1 * jax.random.normal(ks[9], (expand,), jnp.float32)
    m2 = 0.1 * jax.random.normal(ks[10], (expand,), jnp.float32)
    v2 = jnp.abs(1.0 + 0.1 * jax.random.normal(ks[11], (expand,), jnp.float32))

    # bf16 elementwise path on v6e/v7x (bf16 VPU); f32 on v5e / unknown.
    kind = _device_kind()
    use_bf16_ew = any(t in kind for t in ("v6", "v7", "7x"))
    ew_dtype = jnp.bfloat16 if use_bf16_ew else jnp.float32

    w1f, b1, tapsf, b2, w3b = fold_params(w1, g1, be1, m1, v1,
                                          wdw, g2, be2, m2, v2, w3,
                                          ew_dtype=ew_dtype)

    fwd = jax.jit(inverted_block)
    out = jax.block_until_ready(fwd(x, w1f, b1, tapsf, b2, w3b))
    assert out.shape == x.shape

    # Tight check vs a reference mirroring the kernel math exactly
    # (validates layout / roll / mask / BN-fold logic).
    mimic = ref_forward_mimic(x, w1f, b1, tapsf, b2, w3b)
    assert jnp.allclose(out, mimic, atol=2e-2, rtol=2e-2), "mismatch vs kernel-math mimic"

    # Check vs the full-f32 module reference; tolerance reflects bf16 MXU
    # operands (+ bf16 elementwise path on v6e/v7x).
    ref = ref_forward(x, w1, g1, be1, m1, v1, wdw, g2, be2, m2, v2, w3)
    tol = 6e-2 if use_bf16_ew else 3e-2
    assert jnp.allclose(out, ref, atol=tol, rtol=tol), "mismatch vs f32 reference"

    print("KERNEL_OK")
</pallas_src>

<mosaic_0001>
module attributes {stable_mosaic.version = 11 : i64} {
  func.func @_inverted_block_kernel(%arg0: i32, %arg1: memref<2x16x256xf32, #tpu.memory_space<vmem>>, %arg2: memref<64x16xbf16, #tpu.memory_space<vmem>>, %arg3: memref<64x1xf32, #tpu.memory_space<vmem>>, %arg4: memref<64x9xf32, #tpu.memory_space<vmem>>, %arg5: memref<64x1xf32, #tpu.memory_space<vmem>>, %arg6: memref<16x64xbf16, #tpu.memory_space<vmem>>, %arg7: memref<4x256xf32, #tpu.memory_space<vmem>>, %arg8: memref<2x16x256xf32, #tpu.memory_space<vmem>>) attributes {dimension_semantics = [#tpu.dimension_semantics<parallel>], iteration_bounds = array<i64: 1>, scalar_prefetch = 0 : i64, scratch_operands = 0 : i64, tpu.core_type = #tpu.core_type<tc>, window_params = [{transform_indices = @transform_0, window_bounds = array<i64: 2, 16, 256>}, {pipeline_mode = #tpu.pipeline_mode<synchronous>, transform_indices = @transform_1, window_bounds = array<i64: 64, 16>}, {pipeline_mode = #tpu.pipeline_mode<synchronous>, transform_indices = @transform_2, window_bounds = array<i64: 64, 1>}, {pipeline_mode = #tpu.pipeline_mode<synchronous>, transform_indices = @transform_3, window_bounds = array<i64: 64, 9>}, {pipeline_mode = #tpu.pipeline_mode<synchronous>, transform_indices = @transform_4, window_bounds = array<i64: 64, 1>}, {pipeline_mode = #tpu.pipeline_mode<synchronous>, transform_indices = @transform_5, window_bounds = array<i64: 16, 64>}, {pipeline_mode = #tpu.pipeline_mode<synchronous>, transform_indices = @transform_6, window_bounds = array<i64: 4, 256>}, {transform_indices = @transform_7, window_bounds = array<i64: 2, 16, 256>}]} {
    %c0 = arith.constant 0 : index
    %c0_0 = arith.constant 0 : index
    %0 = vector.load %arg2[%c0, %c0_0] : memref<64x16xbf16, #tpu.memory_space<vmem>>, vector<64x16xbf16>
    %c0_1 = arith.constant 0 : index
    %c0_2 = arith.constant 0 : index
    %1 = vector.load %arg6[%c0_1, %c0_2] : memref<16x64xbf16, #tpu.memory_space<vmem>>, vector<16x64xbf16>
    %c0_3 = arith.constant 0 : index
    %c0_4 = arith.constant 0 : index
    %2 = vector.load %arg3[%c0_3, %c0_4] : memref<64x1xf32, #tpu.memory_space<vmem>>, vector<64x1xf32>
    %c0_5 = arith.constant 0 : index
    %c0_6 = arith.constant 0 : index
    %3 = vector.load %arg4[%c0_5, %c0_6] : memref<64x9xf32, #tpu.memory_space<vmem>>, vector<64x9xf32>
    %c0_7 = arith.constant 0 : index
    %c0_8 = arith.constant 0 : index
    %4 = vector.load %arg5[%c0_7, %c0_8] : memref<64x1xf32, #tpu.memory_space<vmem>>, vector<64x1xf32>
    %c0_9 = arith.constant 0 : index
    %c0_10 = arith.constant 0 : index
    %5 = vector.load %arg7[%c0_9, %c0_10] : memref<4x256xf32, #tpu.memory_space<vmem>>, vector<1x256xf32>
    %c1 = arith.constant 1 : index
    %c0_11 = arith.constant 0 : index
    %6 = vector.load %arg7[%c1, %c0_11] : memref<4x256xf32, #tpu.memory_space<vmem>>, vector<1x256xf32>
    %c2 = arith.constant 2 : index
    %c0_12 = arith.constant 0 : index
    %7 = vector.load %arg7[%c2, %c0_12] : memref<4x256xf32, #tpu.memory_space<vmem>>, vector<1x256xf32>
    %c3 = arith.constant 3 : index
    %c0_13 = arith.constant 0 : index
    %8 = vector.load %arg7[%c3, %c0_13] : memref<4x256xf32, #tpu.memory_space<vmem>>, vector<1x256xf32>
    %c0_14 = arith.constant 0 : index
    %c0_15 = arith.constant 0 : index
    %c0_16 = arith.constant 0 : index
    %9 = vector.load %arg1[%c0_14, %c0_15, %c0_16] : memref<2x16x256xf32, #tpu.memory_space<vmem>>, vector<1x16x256xf32>
    %10 = vector.shape_cast %9 : vector<1x16x256xf32> to vector<16x256xf32>
    %11 = arith.truncf %10 : vector<16x256xf32> to vector<16x256xbf16>
    %cst = arith.constant dense<0.000000e+00> : vector<64x256xf32>
    %12 = tpu.matmul %0, %11, %cst {dimension_numbers = #tpu.dot_dimension_numbers<[1], [0], [0], [1], [0, 0, 1, 1], [], []>} : vector<64x16xbf16>, vector<16x256xbf16>, vector<64x256xf32> -> vector<64x256xf32>
    %13 = vector.broadcast %2 : vector<64x1xf32> to vector<64x256xf32>
    %14 = arith.addf %12, %13 : vector<64x256xf32>
    %cst_17 = arith.constant 0.000000e+00 : f32
    %cst_18 = arith.constant 6.000000e+00 : f32
    %15 = vector.broadcast %cst_17 : f32 to vector<64x256xf32>
    %16 = arith.maximumf %15, %14 : vector<64x256xf32>
    %17 = vector.broadcast %cst_18 : f32 to vector<64x256xf32>
    %18 = arith.minimumf %17, %16 : vector<64x256xf32>
    %c1_i32 = arith.constant 1 : i32
    %19 = tpu.dynamic_rotate %18 by %c1_i32 dim 1 : vector<64x256xf32>, i32 -> vector<64x256xf32>
    %20 = vector.broadcast %5 : vector<1x256xf32> to vector<64x256xf32>
    %21 = arith.mulf %19, %20 : vector<64x256xf32>
    %c255_i32 = arith.constant 255 : i32
    %22 = tpu.dynamic_rotate %18 by %c255_i32 dim 1 : vector<64x256xf32>, i32 -> vector<64x256xf32>
    %23 = vector.broadcast %6 : vector<1x256xf32> to vector<64x256xf32>
    %24 = arith.mulf %22, %23 : vector<64x256xf32>
    %25 = vector.extract_strided_slice %3 {offsets = [0, 0], sizes = [64, 1], strides = [1, 1]} : vector<64x9xf32> to vector<64x1xf32>
    %26 = vector.broadcast %25 : vector<64x1xf32> to vector<64x256xf32>
    %27 = arith.mulf %26, %21 : vector<64x256xf32>
    %28 = vector.extract_strided_slice %3 {offsets = [0, 1], sizes = [64, 1], strides = [1, 1]} : vector<64x9xf32> to vector<64x1xf32>
    %29 = vector.broadcast %28 : vector<64x1xf32> to vector<64x256xf32>
    %30 = arith.mulf %29, %18 : vector<64x256xf32>
    %31 = arith.addf %27, %30 : vector<64x256xf32>
    %32 = vector.extract_strided_slice %3 {offsets = [0, 2], sizes = [64, 1], strides = [1, 1]} : vector<64x9xf32> to vector<64x1xf32>
    %33 = vector.broadcast %32 : vector<64x1xf32> to vector<64x256xf32>
    %34 = arith.mulf %33, %24 : vector<64x256xf32>
    %35 = arith.addf %31, %34 : vector<64x256xf32>
    %36 = vector.extract_strided_slice %3 {offsets = [0, 3], sizes = [64, 1], strides = [1, 1]} : vector<64x9xf32> to vector<64x1xf32>
    %37 = vector.broadcast %36 : vector<64x1xf32> to vector<64x256xf32>
    %38 = arith.mulf %37, %21 : vector<64x256xf32>
    %39 = vector.extract_strided_slice %3 {offsets = [0, 4], sizes = [64, 1], strides = [1, 1]} : vector<64x9xf32> to vector<64x1xf32>
    %40 = vector.broadcast %39 : vector<64x1xf32> to vector<64x256xf32>
    %41 = arith.mulf %40, %18 : vector<64x256xf32>
    %42 = arith.addf %38, %41 : vector<64x256xf32>
    %43 = vector.extract_strided_slice %3 {offsets = [0, 5], sizes = [64, 1], strides = [1, 1]} : vector<64x9xf32> to vector<64x1xf32>
    %44 = vector.broadcast %43 : vector<64x1xf32> to vector<64x256xf32>
    %45 = arith.mulf %44, %24 : vector<64x256xf32>
    %46 = arith.addf %42, %45 : vector<64x256xf32>
    %47 = vector.extract_strided_slice %3 {offsets = [0, 6], sizes = [64, 1], strides = [1, 1]} : vector<64x9xf32> to vector<64x1xf32>
    %48 = vector.broadcast %47 : vector<64x1xf32> to vector<64x256xf32>
    %49 = arith.mulf %48, %21 : vector<64x256xf32>
    %50 = vector.extract_strided_slice %3 {offsets = [0, 7], sizes = [64, 1], strides = [1, 1]} : vector<64x9xf32> to vector<64x1xf32>
    %51 = vector.broadcast %50 : vector<64x1xf32> to vector<64x256xf32>
    %52 = arith.mulf %51, %18 : vector<64x256xf32>
    %53 = arith.addf %49, %52 : vector<64x256xf32>
    %54 = vector.extract_strided_slice %3 {offsets = [0, 8], sizes = [64, 1], strides = [1, 1]} : vector<64x9xf32> to vector<64x1xf32>
    %55 = vector.broadcast %54 : vector<64x1xf32> to vector<64x256xf32>
    %56 = arith.mulf %55, %24 : vector<64x256xf32>
    %57 = arith.addf %53, %56 : vector<64x256xf32>
    %58 = vector.broadcast %4 : vector<64x1xf32> to vector<64x256xf32>
    %59 = arith.addf %58, %46 : vector<64x256xf32>
    %c16_i32 = arith.constant 16 : i32
    %60 = tpu.dynamic_rotate %35 by %c16_i32 dim 1 : vector<64x256xf32>, i32 -> vector<64x256xf32>
    %61 = vector.broadcast %7 : vector<1x256xf32> to vector<64x256xf32>
    %62 = arith.mulf %61, %60 : vector<64x256xf32>
    %63 = arith.addf %59, %62 : vector<64x256xf32>
    %c240_i32 = arith.constant 240 : i32
    %64 = tpu.dynamic_rotate %57 by %c240_i32 dim 1 : vector<64x256xf32>, i32 -> vector<64x256xf32>
    %65 = vector.broadcast %8 : vector<1x256xf32> to vector<64x256xf32>
    %66 = arith.mulf %65, %64 : vector<64x256xf32>
    %67 = arith.addf %63, %66 : vector<64x256xf32>
    %cst_19 = arith.constant 0.000000e+00 : f32
    %cst_20 = arith.constant 6.000000e+00 : f32
    %68 = vector.broadcast %cst_19 : f32 to vector<64x256xf32>
    %69 = arith.maximumf %68, %67 : vector<64x256xf32>
    %70 = vector.broadcast %cst_20 : f32 to vector<64x256xf32>
    %71 = arith.minimumf %70, %69 : vector<64x256xf32>
    %72 = arith.truncf %71 : vector<64x256xf32> to vector<64x256xbf16>
    %cst_21 = arith.constant dense<0.000000e+00> : vector<16x256xf32>
    %73 = tpu.matmul %1, %72, %cst_21 {dimension_numbers = #tpu.dot_dimension_numbers<[1], [0], [0], [1], [0, 0, 1, 1], [], []>} : vector<16x64xbf16>, vector<64x256xbf16>, vector<16x256xf32> -> vector<16x256xf32>
    %74 = arith.addf %10, %73 : vector<16x256xf32>
    %c0_22 = arith.constant 0 : index
    %c0_23 = arith.constant 0 : index
    %c0_24 = arith.constant 0 : index
    %75 = vector.load %arg8[%c0_22, %c0_23, %c0_24] : memref<2x16x256xf32, #tpu.memory_space<vmem>>, vector<1x16x256xf32>
    %76 = vector.shape_cast %75 : vector<1x16x256xf32> to vector<16x256xf32>
    %77 = vector.shape_cast %74 : vector<16x256xf32> to vector<1x16x256xf32>
    tpu.vector_store %arg8[%c0_22, %c0_23, %c0_24], %77 {strides = array<i32>} : memref<2x16x256xf32, #tpu.memory_space<vmem>>, vector<1x16x256xf32>,
    %c1_25 = arith.constant 1 : index
    %c0_26 = arith.constant 0 : index
    %c0_27 = arith.constant 0 : index
    %78 = vector.load %arg1[%c1_25, %c0_26, %c0_27] : memref<2x16x256xf32, #tpu.memory_space<vmem>>, vector<1x16x256xf32>
    %79 = vector.shape_cast %78 : vector<1x16x256xf32> to vector<16x256xf32>
    %80 = arith.truncf %79 : vector<16x256xf32> to vector<16x256xbf16>
    %cst_28 = arith.constant dense<0.000000e+00> : vector<64x256xf32>
    %81 = tpu.matmul %0, %80, %cst_28 {dimension_numbers = #tpu.dot_dimension_numbers<[1], [0], [0], [1], [0, 0, 1, 1], [], []>} : vector<64x16xbf16>, vector<16x256xbf16>, vector<64x256xf32> -> vector<64x256xf32>
    %82 = vector.broadcast %2 : vector<64x1xf32> to vector<64x256xf32>
    %83 = arith.addf %81, %82 : vector<64x256xf32>
    %cst_29 = arith.constant 0.000000e+00 : f32
    %cst_30 = arith.constant 6.000000e+00 : f32
    %84 = vector.broadcast %cst_29 : f32 to vector<64x256xf32>
    %85 = arith.maximumf %84, %83 : vector<64x256xf32>
    %86 = vector.broadcast %cst_30 : f32 to vector<64x256xf32>
    %87 = arith.minimumf %86, %85 : vector<64x256xf32>
    %c1_i32_31 = arith.constant 1 : i32
    %88 = tpu.dynamic_rotate %87 by %c1_i32_31 dim 1 : vector<64x256xf32>, i32 -> vector<64x256xf32>
    %89 = vector.broadcast %5 : vector<1x256xf32> to vector<64x256xf32>
    %90 = arith.mulf %88, %89 : vector<64x256xf32>
    %c255_i32_32 = arith.constant 255 : i32
    %91 = tpu.dynamic_rotate %87 by %c255_i32_32 dim 1 : vector<64x256xf32>, i32 -> vector<64x256xf32>
    %92 = vector.broadcast %6 : vector<1x256xf32> to vector<64x256xf32>
    %93 = arith.mulf %91, %92 : vector<64x256xf32>
    %94 = vector.extract_strided_slice %3 {offsets = [0, 0], sizes = [64, 1], strides = [1, 1]} : vector<64x9xf32> to vector<64x1xf32>
    %95 = vector.broadcast %94 : vector<64x1xf32> to vector<64x256xf32>
    %96 = arith.mulf %95, %90 : vector<64x256xf32>
    %97 = vector.extract_strided_slice %3 {offsets = [0, 1], sizes = [64, 1], strides = [1, 1]} : vector<64x9xf32> to vector<64x1xf32>
    %98 = vector.broadcast %97 : vector<64x1xf32> to vector<64x256xf32>
    %99 = arith.mulf %98, %87 : vector<64x256xf32>
    %100 = arith.addf %96, %99 : vector<64x256xf32>
    %101 = vector.extract_strided_slice %3 {offsets = [0, 2], sizes = [64, 1], strides = [1, 1]} : vector<64x9xf32> to vector<64x1xf32>
    %102 = vector.broadcast %101 : vector<64x1xf32> to vector<64x256xf32>
    %103 = arith.mulf %102, %93 : vector<64x256xf32>
    %104 = arith.addf %100, %103 : vector<64x256xf32>
    %105 = vector.extract_strided_slice %3 {offsets = [0, 3], sizes = [64, 1], strides = [1, 1]} : vector<64x9xf32> to vector<64x1xf32>
    %106 = vector.broadcast %105 : vector<64x1xf32> to vector<64x256xf32>
    %107 = arith.mulf %106, %90 : vector<64x256xf32>
    %108 = vector.extract_strided_slice %3 {offsets = [0, 4], sizes = [64, 1], strides = [1, 1]} : vector<64x9xf32> to vector<64x1xf32>
    %109 = vector.broadcast %108 : vector<64x1xf32> to vector<64x256xf32>
    %110 = arith.mulf %109, %87 : vector<64x256xf32>
    %111 = arith.addf %107, %110 : vector<64x256xf32>
    %112 = vector.extract_strided_slice %3 {offsets = [0, 5], sizes = [64, 1], strides = [1, 1]} : vector<64x9xf32> to vector<64x1xf32>
    %113 = vector.broadcast %112 : vector<64x1xf32> to vector<64x256xf32>
    %114 = arith.mulf %113, %93 : vector<64x256xf32>
    %115 = arith.addf %111, %114 : vector<64x256xf32>
    %116 = vector.extract_strided_slice %3 {offsets = [0, 6], sizes = [64, 1], strides = [1, 1]} : vector<64x9xf32> to vector<64x1xf32>
    %117 = vector.broadcast %116 : vector<64x1xf32> to vector<64x256xf32>
    %118 = arith.mulf %117, %90 : vector<64x256xf32>
    %119 = vector.extract_strided_slice %3 {offsets = [0, 7], sizes = [64, 1], strides = [1, 1]} : vector<64x9xf32> to vector<64x1xf32>
    %120 = vector.broadcast %119 : vector<64x1xf32> to vector<64x256xf32>
    %121 = arith.mulf %120, %87 : vector<64x256xf32>
    %122 = arith.addf %118, %121 : vector<64x256xf32>
    %123 = vector.extract_strided_slice %3 {offsets = [0, 8], sizes = [64, 1], strides = [1, 1]} : vector<64x9xf32> to vector<64x1xf32>
    %124 = vector.broadcast %123 : vector<64x1xf32> to vector<64x256xf32>
    %125 = arith.mulf %124, %93 : vector<64x256xf32>
    %126 = arith.addf %122, %125 : vector<64x256xf32>
    %127 = vector.broadcast %4 : vector<64x1xf32> to vector<64x256xf32>
    %128 = arith.addf %127, %115 : vector<64x256xf32>
    %c16_i32_33 = arith.constant 16 : i32
    %129 = tpu.dynamic_rotate %104 by %c16_i32_33 dim 1 : vector<64x256xf32>, i32 -> vector<64x256xf32>
    %130 = vector.broadcast %7 : vector<1x256xf32> to vector<64x256xf32>
    %131 = arith.mulf %130, %129 : vector<64x256xf32>
    %132 = arith.addf %128, %131 : vector<64x256xf32>
    %c240_i32_34 = arith.constant 240 : i32
    %133 = tpu.dynamic_rotate %126 by %c240_i32_34 dim 1 : vector<64x256xf32>, i32 -> vector<64x256xf32>
    %134 = vector.broadcast %8 : vector<1x256xf32> to vector<64x256xf32>
    %135 = arith.mulf %134, %133 : vector<64x256xf32>
    %136 = arith.addf %132, %135 : vector<64x256xf32>
    %cst_35 = arith.constant 0.000000e+00 : f32
    %cst_36 = arith.constant 6.000000e+00 : f32
    %137 = vector.broadcast %cst_35 : f32 to vector<64x256xf32>
    %138 = arith.maximumf %137, %136 : vector<64x256xf32>
    %139 = vector.broadcast %cst_36 : f32 to vector<64x256xf32>
    %140 = arith.minimumf %139, %138 : vector<64x256xf32>
    %141 = arith.truncf %140 : vector<64x256xf32> to vector<64x256xbf16>
    %cst_37 = arith.constant dense<0.000000e+00> : vector<16x256xf32>
    %142 = tpu.matmul %1, %141, %cst_37 {dimension_numbers = #tpu.dot_dimension_numbers<[1], [0], [0], [1], [0, 0, 1, 1], [], []>} : vector<16x64xbf16>, vector<64x256xbf16>, vector<16x256xf32> -> vector<16x256xf32>
    %143 = arith.addf %79, %142 : vector<16x256xf32>
    %c1_38 = arith.constant 1 : index
    %c0_39 = arith.constant 0 : index
    %c0_40 = arith.constant 0 : index
    %144 = vector.load %arg8[%c1_38, %c0_39, %c0_40] : memref<2x16x256xf32, #tpu.memory_space<vmem>>, vector<1x16x256xf32>
    %145 = vector.shape_cast %144 : vector<1x16x256xf32> to vector<16x256xf32>
    %146 = vector.shape_cast %143 : vector<16x256xf32> to vector<1x16x256xf32>
    tpu.vector_store %arg8[%c1_38, %c0_39, %c0_40], %146 {strides = array<i32>} : memref<2x16x256xf32, #tpu.memory_space<vmem>>, vector<1x16x256xf32>,
    return
  }
  func.func @transform_0(%arg0: i32) -> (i32, i32, i32) {
    %c0_i32 = arith.constant 0 : i32
    %c0_i32_0 = arith.constant 0 : i32
    %c0_i32_1 = arith.constant 0 : i32
    return %arg0, %c0_i32, %c0_i32_0 : i32, i32, i32
  }
  func.func @transform_1(%arg0: i32) -> (i32, i32) {
    %c0_i32 = arith.constant 0 : i32
    %c0_i32_0 = arith.constant 0 : i32
    %c0_i32_1 = arith.constant 0 : i32
    return %c0_i32, %c0_i32_0 : i32, i32
  }
  func.func @transform_2(%arg0: i32) -> (i32, i32) {
    %c0_i32 = arith.constant 0 : i32
    %c0_i32_0 = arith.constant 0 : i32
    %c0_i32_1 = arith.constant 0 : i32
    return %c0_i32, %c0_i32_0 : i32, i32
  }
  func.func @transform_3(%arg0: i32) -> (i32, i32) {
    %c0_i32 = arith.constant 0 : i32
    %c0_i32_0 = arith.constant 0 : i32
    %c0_i32_1 = arith.constant 0 : i32
    return %c0_i32, %c0_i32_0 : i32, i32
  }
  func.func @transform_4(%arg0: i32) -> (i32, i32) {
    %c0_i32 = arith.constant 0 : i32
    %c0_i32_0 = arith.constant 0 : i32
    %c0_i32_1 = arith.constant 0 : i32
    return %c0_i32, %c0_i32_0 : i32, i32
  }
  func.func @transform_5(%arg0: i32) -> (i32, i32) {
    %c0_i32 = arith.constant 0 : i32
    %c0_i32_0 = arith.constant 0 : i32
    %c0_i32_1 = arith.constant 0 : i32
    return %c0_i32, %c0_i32_0 : i32, i32
  }
  func.func @transform_6(%arg0: i32) -> (i32, i32) {
    %c0_i32 = arith.constant 0 : i32
    %c0_i32_0 = arith.constant 0 : i32
    %c0_i32_1 = arith.constant 0 : i32
    return %c0_i32, %c0_i32_0 : i32, i32
  }
  func.func @transform_7(%arg0: i32) -> (i32, i32, i32) {
    %c0_i32 = arith.constant 0 : i32
    %c0_i32_0 = arith.constant 0 : i32
    %c0_i32_1 = arith.constant 0 : i32
    return %arg0, %c0_i32, %c0_i32_0 : i32, i32, i32
  }
}

</mosaic_0001>

<llo_original>
// kernel: inverted_block.1
$region0: #{inverted_block.1}
  #allocation0 [shape = 'u32[]', space=smem, size = 0x4, offset = 0x4, fixed_abs, tag = 'smem constant byte address 0x4 - core index']
  #allocation1 [shape = 'u32[144,128]{1,0:T(1,128)}', space=vmem, size = 0x12000, scoped, tag = 'internal scratch']
  %s0 = inlined_call_operand.vmem [shape: f32[2,16,256], index: 0, kind: input, shape index: {}]
  %s1 = inlined_call_operand.vmem [shape: bf16[64,16], index: 1, kind: input, shape index: {}]
  %s2 = inlined_call_operand.vmem [shape: f32[64,1], index: 2, kind: input, shape index: {}]
  %s3 = inlined_call_operand.vmem [shape: f32[64,9], index: 3, kind: input, shape index: {}]
  %s4 = inlined_call_operand.vmem [shape: f32[64,1], index: 4, kind: input, shape index: {}]
  %s5 = inlined_call_operand.vmem [shape: bf16[16,64], index: 5, kind: input, shape index: {}]
  %s6 = inlined_call_operand.vmem [shape: f32[4,256], index: 6, kind: input, shape index: {}]
  %s7 = inlined_call_operand.vmem [shape: f32[2,16,256], index: 7, kind: output, shape index: {}]
  %s8 = sld [smem:[#allocation0]]
  $region38: #{inverted_block.1} parent=0
    _
  %s10 = ssub.s32 1, %s8
  %s11 = scalar_select 0, %s10, %s8
  // Predicated region
  $region2: #{inverted_block.1} parent=0 // pred_check
    _
  $region3: #{inverted_block.1} parent=0 // pred_check_branch
    %13 = sbr.rel (0) target = $region5
  $region4: #{inverted_block.1} parent=0 // pred_region
    _
  $region5: #{inverted_block.1} parent=0 // pred_fallthru
    _
  // Predicated region
  $region6: #{inverted_block.1} parent=0 // pred_check
    _
  $region7: #{inverted_block.1} parent=0 // pred_check_branch
    %15 = sbr.rel (0) target = $region9
  $region8: #{inverted_block.1} parent=0 // pred_region
    _
  $region9: #{inverted_block.1} parent=0 // pred_fallthru
    _
  // Predicated region
  $region10: #{inverted_block.1} parent=0 // pred_check
    _
  $region11: #{inverted_block.1} parent=0 // pred_check_branch
    %17 = sbr.rel (0) target = $region13
  $region12: #{inverted_block.1} parent=0 // pred_region
    _
  $region13: #{inverted_block.1} parent=0 // pred_fallthru
    _
  // Predicated region
  $region14: #{inverted_block.1} parent=0 // pred_check
    _
  $region15: #{inverted_block.1} parent=0 // pred_check_branch
    %19 = sbr.rel (0) target = $region17
  $region16: #{inverted_block.1} parent=0 // pred_region
    _
  $region17: #{inverted_block.1} parent=0 // pred_fallthru
    _
  // Predicated region
  $region18: #{inverted_block.1} parent=0 // pred_check
    _
  $region19: #{inverted_block.1} parent=0 // pred_check_branch
    %21 = sbr.rel (0) target = $region21
  $region20: #{inverted_block.1} parent=0 // pred_region
    _
  $region21: #{inverted_block.1} parent=0 // pred_fallthru
    _
  // Predicated region
  $region22: #{inverted_block.1} parent=0 // pred_check
    _
  $region23: #{inverted_block.1} parent=0 // pred_check_branch
    %23 = sbr.rel (0) target = $region25
  $region24: #{inverted_block.1} parent=0 // pred_region
    _
  $region25: #{inverted_block.1} parent=0 // pred_fallthru
    _
  // Predicated region
  $region26: #{inverted_block.1} parent=0 // pred_check
    _
  $region27: #{inverted_block.1} parent=0 // pred_check_branch
    %25 = sbr.rel (0) target = $region29
  $region28: #{inverted_block.1} parent=0 // pred_region
    _
  $region29: #{inverted_block.1} parent=0 // pred_fallthru
    _
  %v27 = vld [vmem:[%s1] sm:$0xf]
  %v28 = vld [vmem:[%s1 + $0x4] sm:$0xf]
  %v29 = vld [vmem:[%s1 + $0x8] sm:$0xf]
  %v30 = vld [vmem:[%s1 + $0xc] sm:$0xf]
  %v31 = vld [vmem:[%s1 + $0x10] sm:$0xf]
  %v32 = vld [vmem:[%s1 + $0x14] sm:$0xf]
  %v33 = vld [vmem:[%s1 + $0x18] sm:$0xf]
  %v34 = vld [vmem:[%s1 + $0x1c] sm:$0xf]
  %v35 = vld [vmem:[%s5] sm:$0xf]
  %v36 = vld [vmem:[%s5 + $0x4] sm:$0xf]
  %v37 = vld [vmem:[%s2] sm:$0xff]
  %v38 = vld [vmem:[%s2 + $0x8] sm:$0xff]
  %v39 = vld [vmem:[%s2 + $0x10] sm:$0xff]
  %v40 = vld [vmem:[%s2 + $0x18] sm:$0xff]
  %v41 = vld [vmem:[%s2 + $0x20] sm:$0xff]
  %v42 = vld [vmem:[%s2 + $0x28] sm:$0xff]
  %v43 = vld [vmem:[%s2 + $0x30] sm:$0xff]
  %v44 = vld [vmem:[%s2 + $0x38] sm:$0xff]
  %v45 = vld [vmem:[%s3] sm:$0xff]
  %v46 = vld [vmem:[%s3 + $0x8] sm:$0xff]
  %v47 = vld [vmem:[%s3 + $0x10] sm:$0xff]
  %v48 = vld [vmem:[%s3 + $0x18] sm:$0xff]
  %v49 = vld [vmem:[%s3 + $0x20] sm:$0xff]
  %v50 = vld [vmem:[%s3 + $0x28] sm:$0xff]
  %v51 = vld [vmem:[%s3 + $0x30] sm:$0xff]
  %v52 = vld [vmem:[%s3 + $0x38] sm:$0xff]
  %v53 = vld [vmem:[%s4] sm:$0xff]
  %v54 = vld [vmem:[%s4 + $0x8] sm:$0xff]
  %v55 = vld [vmem:[%s4 + $0x10] sm:$0xff]
  %v56 = vld [vmem:[%s4 + $0x18] sm:$0xff]
  %v57 = vld [vmem:[%s4 + $0x20] sm:$0xff]
  %v58 = vld [vmem:[%s4 + $0x28] sm:$0xff]
  %v59 = vld [vmem:[%s4 + $0x30] sm:$0xff]
  %v60 = vld [vmem:[%s4 + $0x38] sm:$0xff]
  %v61 = vld [vmem:[%s6] ss:$4 sm:$0x3]
  %s62 = scalar_lea.vmem %s6, 1
  %v63 = vld [vmem:[%s62] ss:$4 sm:$0x3]
  %s64 = scalar_lea.vmem %s6, 2
  %v65 = vld [vmem:[%s64] ss:$4 sm:$0x3]
  %s66 = scalar_lea.vmem %s6, 3
  %v67 = vld [vmem:[%s66] ss:$4 sm:$0x3]
  %v68 = vld [vmem:[%s0] sm:$0xff]
  %v69 = vld [vmem:[%s0 + $0x8] sm:$0xff]
  %v70 = vld [vmem:[%s0 + $0x10] sm:$0xff]
  %v71 = vld [vmem:[%s0 + $0x18] sm:$0xff]
  %v72 = vpack.c.bf16 %v70, %v68
  %v73 = vpack.c.bf16 %v71, %v69
  %75 = vset.pattern.permute.xlu0 0
  %76 = vperm.xlu0 %75, %v37
  %v77 = vpop.permute.xlu0 %76
  %80 = vset.pattern.permute.xlu0 0
  %81 = vperm.xlu0 %80, %v38
  %v82 = vpop.permute.xlu0 %81
  %85 = vset.pattern.permute.xlu0 0
  %86 = vperm.xlu0 %85, %v39
  %v87 = vpop.permute.xlu0 %86
  %90 = vset.pattern.permute.xlu0 0
  %91 = vperm.xlu0 %90, %v40
  %v92 = vpop.permute.xlu0 %91
  %95 = vset.pattern.permute.xlu0 0
  %96 = vperm.xlu0 %95, %v41
  %v97 = vpop.permute.xlu0 %96
  %100 = vset.pattern.permute.xlu0 0
  %101 = vperm.xlu0 %100, %v42
  %v102 = vpop.permute.xlu0 %101
  %105 = vset.pattern.permute.xlu0 0
  %106 = vperm.xlu0 %105, %v43
  %v107 = vpop.permute.xlu0 %106
  %110 = vset.pattern.permute.xlu0 0
  %111 = vperm.xlu0 %110, %v44
  %v112 = vpop.permute.xlu0 %111
  %v122 = vunpack.c.l.b16 %v27
  %v123 = vunpack.c.l.b16 %v28
  %v124 = vunpack.c.l.b16 %v29
  %v125 = vunpack.c.l.b16 %v30
  %v126 = vunpack.c.l.b16 %v31
  %v127 = vunpack.c.l.b16 %v32
  %v128 = vunpack.c.l.b16 %v33
  %v129 = vunpack.c.l.b16 %v34
  %v130 = vpack.c.b16 %v123, %v122
  %v131 = vpack.c.b16 %v125, %v124
  %v132 = vpack.c.b16 %v127, %v126
  %v133 = vpack.c.b16 %v129, %v128
  %vm134 = vcmask 130048
  %v136 = vsel %vm134, %v130, 0
  %v139 = vsel %vm134, %v131, 0
  %v142 = vsel %vm134, %v132, 0
  %v145 = vsel %vm134, %v133, 0
  %147 = vmatprep.subr.bf16.mxu0 %v73
  %148 = vmatpush1.bf16.msra.mxu0 %v72
  %149 = vmatprep.subr.bf16.mxu0 0
  %150 = vmatpush1.bf16.msra.mxu0 0
  %151 = vmatprep.subr.bf16.mxu0 0
  %152 = vmatpush1.bf16.msra.mxu0 0
  %153 = vmatprep.subr.bf16.mxu0 0
  %154 = vmatpush1.bf16.msra.mxu0 0
  %155 = vmatprep.subr.bf16.mxu0 0
  %156 = vmatpush1.bf16.msra.mxu0 0
  %157 = vmatprep.subr.bf16.mxu0 0
  %158 = vmatpush1.bf16.msra.mxu0 0
  %159 = vmatprep.subr.bf16.mxu0 0
  %160 = vmatpush1.bf16.msra.mxu0 0
  %161 = vmatprep.subr.bf16.mxu0 0
  %162 = vmatpush1.bf16.msra.mxu0 0
  %163 = vmatprep.subr.bf16.mxu0 0
  %164 = vmatpush1.bf16.msra.mxu0 0
  %165 = vmatprep.subr.bf16.mxu0 0
  %166 = vmatpush1.bf16.msra.mxu0 0
  %167 = vmatprep.subr.bf16.mxu0 0
  %168 = vmatpush1.bf16.msra.mxu0 0
  %169 = vmatprep.subr.bf16.mxu0 0
  %170 = vmatpush1.bf16.msra.mxu0 0
  %171 = vmatprep.subr.bf16.mxu0 0
  %172 = vmatpush1.bf16.msra.mxu0 0
  %173 = vmatprep.subr.bf16.mxu0 0
  %174 = vmatpush1.bf16.msra.mxu0 0
  %175 = vmatprep.subr.bf16.mxu0 0
  %176 = vmatpush1.bf16.msra.mxu0 0
  %177 = vmatprep.subr.bf16.mxu0 0
  %178 = vmatpush1.bf16.msra.mxu0 0
  %179 = vmatprep.mubr.bf16.mxu0 0
  %180 = vmatmul.mubr.bf16.gmra.mrb[0].mxu0 %v136
  %v181 = vpop.f32.mrb[0].mxu0
  %v182 = vadd.f32 %v77, %v181
  %v183 = vpop.f32.mrb[0].mxu0
  %v184 = vadd.f32 %v77, %v183
  %v185 = vpop.f32.mrb[0].mxu0
  %v186 = vadd.f32 %v82, %v185
  %v187 = vpop.f32.mrb[0].mxu0
  %v188 = vadd.f32 %v82, %v187
  %189 = vmatprep.mubr.bf16.mxu0 0
  %190 = vmatmul.mubr.bf16.gmra.mrb[0].mxu0 %v139
  %v191 = vpop.f32.mrb[0].mxu0
  %v192 = vadd.f32 %v87, %v191
  %v193 = vpop.f32.mrb[0].mxu0
  %v194 = vadd.f32 %v87, %v193
  %v195 = vpop.f32.mrb[0].mxu0
  %v196 = vadd.f32 %v92, %v195
  %v197 = vpop.f32.mrb[0].mxu0
  %v198 = vadd.f32 %v92, %v197
  %199 = vmatprep.mubr.bf16.mxu0 0
  %200 = vmatmul.mubr.bf16.gmra.mrb[0].mxu0 %v142
  %v201 = vpop.f32.mrb[0].mxu0
  %v202 = vadd.f32 %v97, %v201
  %v203 = vpop.f32.mrb[0].mxu0
  %v204 = vadd.f32 %v97, %v203
  %v205 = vpop.f32.mrb[0].mxu0
  %v206 = vadd.f32 %v102, %v205
  %v207 = vpop.f32.mrb[0].mxu0
  %v208 = vadd.f32 %v102, %v207
  %209 = vmatprep.mubr.bf16.mxu0 0
  %210 = vmatmul.mubr.bf16.gmra.mrb[0].mxu0 %v145
  %v211 = vpop.f32.mrb[0].mxu0
  %v212 = vadd.f32 %v107, %v211
  %v213 = vpop.f32.mrb[0].mxu0
  %v214 = vadd.f32 %v107, %v213
  %v215 = vpop.f32.mrb[0].mxu0
  %v216 = vadd.f32 %v112, %v215
  %v217 = vpop.f32.mrb[0].mxu0
  %v218 = vadd.f32 %v112, %v217
  %219 = vdwg.mxu0
  %v220 = vmax.f32 %v182, 0.0
  %v221 = vmax.f32 %v184, 0.0
  %v222 = vmax.f32 %v186, 0.0
  %v223 = vmax.f32 %v188, 0.0
  %v224 = vmax.f32 %v192, 0.0
  %v225 = vmax.f32 %v194, 0.0
  %v226 = vmax.f32 %v196, 0.0
  %v227 = vmax.f32 %v198, 0.0
  %v228 = vmax.f32 %v202, 0.0
  %v229 = vmax.f32 %v204, 0.0
  %v230 = vmax.f32 %v206, 0.0
  %v231 = vmax.f32 %v208, 0.0
  %v232 = vmax.f32 %v212, 0.0
  %v233 = vmax.f32 %v214, 0.0
  %v234 = vmax.f32 %v216, 0.0
  %v235 = vmax.f32 %v218, 0.0
  %v236 = vmin.f32 %v220, 6.0
  %v237 = vmin.f32 %v221, 6.0
  %v238 = vmin.f32 %v222, 6.0
  %v239 = vmin.f32 %v223, 6.0
  %v240 = vmin.f32 %v224, 6.0
  %v241 = vmin.f32 %v225, 6.0
  %v242 = vmin.f32 %v226, 6.0
  %v243 = vmin.f32 %v227, 6.0
  %v244 = vmin.f32 %v228, 6.0
  %v245 = vmin.f32 %v229, 6.0
  %v246 = vmin.f32 %v230, 6.0
  %v247 = vmin.f32 %v231, 6.0
  %v248 = vmin.f32 %v232, 6.0
  %v249 = vmin.f32 %v233, 6.0
  %v250 = vmin.f32 %v234, 6.0
  %v251 = vmin.f32 %v235, 6.0
  %252 = vrot.lane.b32.xlu0 %v236, 1
  %v253 = vpop.permute.xlu0 %252
  %254 = vrot.lane.b32.xlu0 %v238, 1
  %v255 = vpop.permute.xlu0 %254
  %256 = vrot.lane.b32.xlu0 %v240, 1
  %v257 = vpop.permute.xlu0 %256
  %258 = vrot.lane.b32.xlu0 %v242, 1
  %v259 = vpop.permute.xlu0 %258
  %260 = vrot.lane.b32.xlu0 %v244, 1
  %v261 = vpop.permute.xlu0 %260
  %262 = vrot.lane.b32.xlu0 %v246, 1
  %v263 = vpop.permute.xlu0 %262
  %264 = vrot.lane.b32.xlu0 %v248, 1
  %v265 = vpop.permute.xlu0 %264
  %266 = vrot.lane.b32.xlu0 %v250, 1
  %v267 = vpop.permute.xlu0 %266
  %268 = vrot.lane.b32.xlu0 %v237, 1
  %v269 = vpop.permute.xlu0 %268
  %270 = vrot.lane.b32.xlu0 %v239, 1
  %v271 = vpop.permute.xlu0 %270
  %272 = vrot.lane.b32.xlu0 %v241, 1
  %v273 = vpop.permute.xlu0 %272
  %274 = vrot.lane.b32.xlu0 %v243, 1
  %v275 = vpop.permute.xlu0 %274
  %276 = vrot.lane.b32.xlu0 %v245, 1
  %v277 = vpop.permute.xlu0 %276
  %278 = vrot.lane.b32.xlu0 %v247, 1
  %v279 = vpop.permute.xlu0 %278
  %280 = vrot.lane.b32.xlu0 %v249, 1
  %v281 = vpop.permute.xlu0 %280
  %282 = vrot.lane.b32.xlu0 %v251, 1
  %v283 = vpop.permute.xlu0 %282
  %v284 = vlaneseq
  %v285 = vand.u32 %v284, 127
  %vm286 = vcmp.lt.s32.totalorder %v285, 1
  %v287 = vsel %vm286, %v253, %v269
  %v288 = vsel %vm286, %v255, %v271
  %v289 = vsel %vm286, %v257, %v273
  %v290 = vsel %vm286, %v259, %v275
  %v291 = vsel %vm286, %v261, %v277
  %v292 = vsel %vm286, %v263, %v279
  %v293 = vsel %vm286, %v265, %v281
  %v294 = vsel %vm286, %v267, %v283
  %v295 = vsel %vm286, %v269, %v253
  %v296 = vsel %vm286, %v271, %v255
  %v297 = vsel %vm286, %v273, %v257
  %v298 = vsel %vm286, %v275, %v259
  %v299 = vsel %vm286, %v277, %v261
  %v300 = vsel %vm286, %v279, %v263
  %v301 = vsel %vm286, %v281, %v265
  %v302 = vsel %vm286, %v283, %v267
  %v304 = vlaneseq
  %v305 = vshrl.u32 %v304, 7
  %v306 = vsub.s32 0, %v305
  %v307 = vrot.slane %v61, %v306
  %v308 = vlaneseq
  %v309 = vshrl.u32 %v308, 7
  %v310 = vsub.s32 1, %v309
  %v311 = vrot.slane %v61, %v310
  %v314 = vmul.f32 %v295, %v307
  %v315 = vmul.f32 %v287, %v311
  %v316 = vmul.f32 %v296, %v307
  %v317 = vmul.f32 %v288, %v311
  %v318 = vmul.f32 %v297, %v307
  %v319 = vmul.f32 %v289, %v311
  %v320 = vmul.f32 %v298, %v307
  %v321 = vmul.f32 %v290, %v311
  %v322 = vmul.f32 %v299, %v307
  %v323 = vmul.f32 %v291, %v311
  %v324 = vmul.f32 %v300, %v307
  %v325 = vmul.f32 %v292, %v311
  %v326 = vmul.f32 %v301, %v307
  %v327 = vmul.f32 %v293, %v311
  %v328 = vmul.f32 %v302, %v307
  %v329 = vmul.f32 %v294, %v311
  %330 = vrot.lane.b32.xlu0 %v236, 127
  %v331 = vpop.permute.xlu0 %330
  %332 = vrot.lane.b32.xlu0 %v238, 127
  %v333 = vpop.permute.xlu0 %332
  %334 = vrot.lane.b32.xlu0 %v240, 127
  %v335 = vpop.permute.xlu0 %334
  %336 = vrot.lane.b32.xlu0 %v242, 127
  %v337 = vpop.permute.xlu0 %336
  %338 = vrot.lane.b32.xlu0 %v244, 127
  %v339 = vpop.permute.xlu0 %338
  %340 = vrot.lane.b32.xlu0 %v246, 127
  %v341 = vpop.permute.xlu0 %340
  %342 = vrot.lane.b32.xlu0 %v248, 127
  %v343 = vpop.permute.xlu0 %342
  %344 = vrot.lane.b32.xlu0 %v250, 127
  %v345 = vpop.permute.xlu0 %344
  %346 = vrot.lane.b32.xlu0 %v237, 127
  %v347 = vpop.permute.xlu0 %346
  %348 = vrot.lane.b32.xlu0 %v239, 127
  %v349 = vpop.permute.xlu0 %348
  %350 = vrot.lane.b32.xlu0 %v241, 127
  %v351 = vpop.permute.xlu0 %350
  %352 = vrot.lane.b32.xlu0 %v243, 127
  %v353 = vpop.permute.xlu0 %352
  %354 = vrot.lane.b32.xlu0 %v245, 127
  %v355 = vpop.permute.xlu0 %354
  %356 = vrot.lane.b32.xlu0 %v247, 127
  %v357 = vpop.permute.xlu0 %356
  %358 = vrot.lane.b32.xlu0 %v249, 127
  %v359 = vpop.permute.xlu0 %358
  %360 = vrot.lane.b32.xlu0 %v251, 127
  %v361 = vpop.permute.xlu0 %360
  %vm362 = vcmp.lt.s32.totalorder %v285, 127
  %v363 = vsel %vm362, %v331, %v347
  %v364 = vsel %vm362, %v333, %v349
  %v365 = vsel %vm362, %v335, %v351
  %v366 = vsel %vm362, %v337, %v353
  %v367 = vsel %vm362, %v339, %v355
  %v368 = vsel %vm362, %v341, %v357
  %v369 = vsel %vm362, %v343, %v359
  %v370 = vsel %vm362, %v345, %v361
  %v371 = vsel %vm362, %v347, %v331
  %v372 = vsel %vm362, %v349, %v333
  %v373 = vsel %vm362, %v351, %v335
  %v374 = vsel %vm362, %v353, %v337
  %v375 = vsel %vm362, %v355, %v339
  %v376 = vsel %vm362, %v357, %v341
  %v377 = vsel %vm362, %v359, %v343
  %v378 = vsel %vm362, %v361, %v345
  %v380 = vlaneseq
  %v381 = vshrl.u32 %v380, 7
  %v382 = vsub.s32 0, %v381
  %v383 = vrot.slane %v63, %v382
  %v384 = vlaneseq
  %v385 = vshrl.u32 %v384, 7
  %v386 = vsub.s32 1, %v385
  %v387 = vrot.slane %v63, %v386
  %v390 = vmul.f32 %v363, %v383
  %v391 = vmul.f32 %v371, %v387
  %v392 = vmul.f32 %v364, %v383
  %v393 = vmul.f32 %v372, %v387
  %v394 = vmul.f32 %v365, %v383
  %v395 = vmul.f32 %v373, %v387
  %v396 = vmul.f32 %v366, %v383
  %v397 = vmul.f32 %v374, %v387
  %v398 = vmul.f32 %v367, %v383
  %v399 = vmul.f32 %v375, %v387
  %v400 = vmul.f32 %v368, %v383
  %v401 = vmul.f32 %v376, %v387
  %v402 = vmul.f32 %v369, %v383
  %v403 = vmul.f32 %v377, %v387
  %v404 = vmul.f32 %v370, %v383
  %v405 = vmul.f32 %v378, %v387
  %407 = vset.pattern.permute.xlu0 0
  %408 = vperm.xlu0 %407, %v45
  %v409 = vpop.permute.xlu0 %408
  %412 = vset.pattern.permute.xlu0 0
  %413 = vperm.xlu0 %412, %v46
  %v414 = vpop.permute.xlu0 %413
  %417 = vset.pattern.permute.xlu0 0
  %418 = vperm.xlu0 %417, %v47
  %v419 = vpop.permute.xlu0 %418
  %422 = vset.pattern.permute.xlu0 0
  %423 = vperm.xlu0 %422, %v48
  %v424 = vpop.permute.xlu0 %423
  %427 = vset.pattern.permute.xlu0 0
  %428 = vperm.xlu0 %427, %v49
  %v429 = vpop.permute.xlu0 %428
  %432 = vset.pattern.permute.xlu0 0
  %433 = vperm.xlu0 %432, %v50
  %v434 = vpop.permute.xlu0 %433
  %437 = vset.pattern.permute.xlu0 0
  %438 = vperm.xlu0 %437, %v51
  %v439 = vpop.permute.xlu0 %438
  %442 = vset.pattern.permute.xlu0 0
  %443 = vperm.xlu0 %442, %v52
  %v444 = vpop.permute.xlu0 %443
  %v446 = vmul.f32 %v409, %v314
  %v447 = vmul.f32 %v409, %v315
  %v448 = vmul.f32 %v414, %v316
  %v449 = vmul.f32 %v414, %v317
  %v450 = vmul.f32 %v419, %v318
  %v451 = vmul.f32 %v419, %v319
  %v452 = vmul.f32 %v424, %v320
  %v453 = vmul.f32 %v424, %v321
  %v454 = vmul.f32 %v429, %v322
  %v455 = vmul.f32 %v429, %v323
  %v456 = vmul.f32 %v434, %v324
  %v457 = vmul.f32 %v434, %v325
  %v458 = vmul.f32 %v439, %v326
  %v459 = vmul.f32 %v439, %v327
  %v460 = vmul.f32 %v444, %v328
  %v461 = vmul.f32 %v444, %v329
  %462 = vset.pattern.permute.xlu0 1
  %463 = vperm.xlu0 %462, %v45
  %v464 = vpop.permute.xlu0 %463
  %466 = vset.pattern.permute.xlu0 1
  %467 = vperm.xlu0 %466, %v46
  %v468 = vpop.permute.xlu0 %467
  %470 = vset.pattern.permute.xlu0 1
  %471 = vperm.xlu0 %470, %v47
  %v472 = vpop.permute.xlu0 %471
  %474 = vset.pattern.permute.xlu0 1
  %475 = vperm.xlu0 %474, %v48
  %v476 = vpop.permute.xlu0 %475
  %478 = vset.pattern.permute.xlu0 1
  %479 = vperm.xlu0 %478, %v49
  %v480 = vpop.permute.xlu0 %479
  %482 = vset.pattern.permute.xlu0 1
  %483 = vperm.xlu0 %482, %v50
  %v484 = vpop.permute.xlu0 %483
  %486 = vset.pattern.permute.xlu0 1
  %487 = vperm.xlu0 %486, %v51
  %v488 = vpop.permute.xlu0 %487
  %490 = vset.pattern.permute.xlu0 1
  %491 = vperm.xlu0 %490, %v52
  %v492 = vpop.permute.xlu0 %491
  %v494 = vmul.f32 %v464, %v236
  %v495 = vmul.f32 %v464, %v237
  %v496 = vmul.f32 %v468, %v238
  %v497 = vmul.f32 %v468, %v239
  %v498 = vmul.f32 %v472, %v240
  %v499 = vmul.f32 %v472, %v241
  %v500 = vmul.f32 %v476, %v242
  %v501 = vmul.f32 %v476, %v243
  %v502 = vmul.f32 %v480, %v244
  %v503 = vmul.f32 %v480, %v245
  %v504 = vmul.f32 %v484, %v246
  %v505 = vmul.f32 %v484, %v247
  %v506 = vmul.f32 %v488, %v248
  %v507 = vmul.f32 %v488, %v249
  %v508 = vmul.f32 %v492, %v250
  %v509 = vmul.f32 %v492, %v251
  %v510 = vadd.f32 %v446, %v494
  %v511 = vadd.f32 %v447, %v495
  %v512 = vadd.f32 %v448, %v496
  %v513 = vadd.f32 %v449, %v497
  %v514 = vadd.f32 %v450, %v498
  %v515 = vadd.f32 %v451, %v499
  %v516 = vadd.f32 %v452, %v500
  %v517 = vadd.f32 %v453, %v501
  %v518 = vadd.f32 %v454, %v502
  %v519 = vadd.f32 %v455, %v503
  %v520 = vadd.f32 %v456, %v504
  %v521 = vadd.f32 %v457, %v505
  %v522 = vadd.f32 %v458, %v506
  %v523 = vadd.f32 %v459, %v507
  %v524 = vadd.f32 %v460, %v508
  %v525 = vadd.f32 %v461, %v509
  %526 = vset.pattern.permute.xlu0 2
  %527 = vperm.xlu0 %526, %v45
  %v528 = vpop.permute.xlu0 %527
  %530 = vset.pattern.permute.xlu0 2
  %531 = vperm.xlu0 %530, %v46
  %v532 = vpop.permute.xlu0 %531
  %534 = vset.pattern.permute.xlu0 2
  %535 = vperm.xlu0 %534, %v47
  %v536 = vpop.permute.xlu0 %535
  %538 = vset.pattern.permute.xlu0 2
  %539 = vperm.xlu0 %538, %v48
  %v540 = vpop.permute.xlu0 %539
  %542 = vset.pattern.permute.xlu0 2
  %543 = vperm.xlu0 %542, %v49
  %v544 = vpop.permute.xlu0 %543
  %546 = vset.pattern.permute.xlu0 2
  %547 = vperm.xlu0 %546, %v50
  %v548 = vpop.permute.xlu0 %547
  %550 = vset.pattern.permute.xlu0 2
  %551 = vperm.xlu0 %550, %v51
  %v552 = vpop.permute.xlu0 %551
  %554 = vset.pattern.permute.xlu0 2
  %555 = vperm.xlu0 %554, %v52
  %v556 = vpop.permute.xlu0 %555
  %v558 = vmul.f32 %v528, %v390
  %v559 = vmul.f32 %v528, %v391
  %v560 = vmul.f32 %v532, %v392
  %v561 = vmul.f32 %v532, %v393
  %v562 = vmul.f32 %v536, %v394
  %v563 = vmul.f32 %v536, %v395
  %v564 = vmul.f32 %v540, %v396
  %v565 = vmul.f32 %v540, %v397
  %v566 = vmul.f32 %v544, %v398
  %v567 = vmul.f32 %v544, %v399
  %v568 = vmul.f32 %v548, %v400
  %v569 = vmul.f32 %v548, %v401
  %v570 = vmul.f32 %v552, %v402
  %v571 = vmul.f32 %v552, %v403
  %v572 = vmul.f32 %v556, %v404
  %v573 = vmul.f32 %v556, %v405
  %v574 = vadd.f32 %v510, %v558
  %v575 = vadd.f32 %v511, %v559
  %v576 = vadd.f32 %v512, %v560
  %v577 = vadd.f32 %v513, %v561
  %v578 = vadd.f32 %v514, %v562
  %v579 = vadd.f32 %v515, %v563
  %v580 = vadd.f32 %v516, %v564
  %v581 = vadd.f32 %v517, %v565
  %v582 = vadd.f32 %v518, %v566
  %v583 = vadd.f32 %v519, %v567
  %v584 = vadd.f32 %v520, %v568
  %v585 = vadd.f32 %v521, %v569
  %v586 = vadd.f32 %v522, %v570
  %v587 = vadd.f32 %v523, %v571
  %v588 = vadd.f32 %v524, %v572
  %v589 = vadd.f32 %v525, %v573
  %590 = vset.pattern.permute.xlu0 3
  %591 = vperm.xlu0 %590, %v45
  %v592 = vpop.permute.xlu0 %591
  %594 = vset.pattern.permute.xlu0 3
  %595 = vperm.xlu0 %594, %v46
  %v596 = vpop.permute.xlu0 %595
  %598 = vset.pattern.permute.xlu0 3
  %599 = vperm.xlu0 %598, %v47
  %v600 = vpop.permute.xlu0 %599
  %602 = vset.pattern.permute.xlu0 3
  %603 = vperm.xlu0 %602, %v48
  %v604 = vpop.permute.xlu0 %603
  %606 = vset.pattern.permute.xlu0 3
  %607 = vperm.xlu0 %606, %v49
  %v608 = vpop.permute.xlu0 %607
  %610 = vset.pattern.permute.xlu0 3
  %611 = vperm.xlu0 %610, %v50
  %v612 = vpop.permute.xlu0 %611
  %614 = vset.pattern.permute.xlu0 3
  %615 = vperm.xlu0 %614, %v51
  %v616 = vpop.permute.xlu0 %615
  %618 = vset.pattern.permute.xlu0 3
  %619 = vperm.xlu0 %618, %v52
  %v620 = vpop.permute.xlu0 %619
  %v622 = vmul.f32 %v592, %v314
  %v623 = vmul.f32 %v592, %v315
  %v624 = vmul.f32 %v596, %v316
  %v625 = vmul.f32 %v596, %v317
  %v626 = vmul.f32 %v600, %v318
  %v627 = vmul.f32 %v600, %v319
  %v628 = vmul.f32 %v604, %v320
  %v629 = vmul.f32 %v604, %v321
  %v630 = vmul.f32 %v608, %v322
  %v631 = vmul.f32 %v608, %v323
  %v632 = vmul.f32 %v612, %v324
  %v633 = vmul.f32 %v612, %v325
  %v634 = vmul.f32 %v616, %v326
  %v635 = vmul.f32 %v616, %v327
  %v636 = vmul.f32 %v620, %v328
  %v637 = vmul.f32 %v620, %v329
  %638 = vset.pattern.permute.xlu0 4
  %639 = vperm.xlu0 %638, %v45
  %v640 = vpop.permute.xlu0 %639
  %642 = vset.pattern.permute.xlu0 4
  %643 = vperm.xlu0 %642, %v46
  %v644 = vpop.permute.xlu0 %643
  %646 = vset.pattern.permute.xlu0 4
  %647 = vperm.xlu0 %646, %v47
  %v648 = vpop.permute.xlu0 %647
  %650 = vset.pattern.permute.xlu0 4
  %651 = vperm.xlu0 %650, %v48
  %v652 = vpop.permute.xlu0 %651
  %654 = vset.pattern.permute.xlu0 4
  %655 = vperm.xlu0 %654, %v49
  %v656 = vpop.permute.xlu0 %655
  %658 = vset.pattern.permute.xlu0 4
  %659 = vperm.xlu0 %658, %v50
  %v660 = vpop.permute.xlu0 %659
  %662 = vset.pattern.permute.xlu0 4
  %663 = vperm.xlu0 %662, %v51
  %v664 = vpop.permute.xlu0 %663
  %666 = vset.pattern.permute.xlu0 4
  %667 = vperm.xlu0 %666, %v52
  %v668 = vpop.permute.xlu0 %667
  %v670 = vmul.f32 %v640, %v236
  %v671 = vmul.f32 %v640, %v237
  %v672 = vmul.f32 %v644, %v238
  %v673 = vmul.f32 %v644, %v239
  %v674 = vmul.f32 %v648, %v240
  %v675 = vmul.f32 %v648, %v241
  %v676 = vmul.f32 %v652, %v242
  %v677 = vmul.f32 %v652, %v243
  %v678 = vmul.f32 %v656, %v244
  %v679 = vmul.f32 %v656, %v245
  %v680 = vmul.f32 %v660, %v246
  %v681 = vmul.f32 %v660, %v247
  %v682 = vmul.f32 %v664, %v248
  %v683 = vmul.f32 %v664, %v249
  %v684 = vmul.f32 %v668, %v250
  %v685 = vmul.f32 %v668, %v251
  %v686 = vadd.f32 %v622, %v670
  %v687 = vadd.f32 %v623, %v671
  %v688 = vadd.f32 %v624, %v672
  %v689 = vadd.f32 %v625, %v673
  %v690 = vadd.f32 %v626, %v674
  %v691 = vadd.f32 %v627, %v675
  %v692 = vadd.f32 %v628, %v676
  %v693 = vadd.f32 %v629, %v677
  %v694 = vadd.f32 %v630, %v678
  %v695 = vadd.f32 %v631, %v679
  %v696 = vadd.f32 %v632, %v680
  %v697 = vadd.f32 %v633, %v681
  %v698 = vadd.f32 %v634, %v682
  %v699 = vadd.f32 %v635, %v683
  %v700 = vadd.f32 %v636, %v684
  %v701 = vadd.f32 %v637, %v685
  %702 = vset.pattern.permute.xlu0 5
  %703 = vperm.xlu0 %702, %v45
  %v704 = vpop.permute.xlu0 %703
  %706 = vset.pattern.permute.xlu0 5
  %707 = vperm.xlu0 %706, %v46
  %v708 = vpop.permute.xlu0 %707
  %710 = vset.pattern.permute.xlu0 5
  %711 = vperm.xlu0 %710, %v47
  %v712 = vpop.permute.xlu0 %711
  %714 = vset.pattern.permute.xlu0 5
  %715 = vperm.xlu0 %714, %v48
  %v716 = vpop.permute.xlu0 %715
  %718 = vset.pattern.permute.xlu0 5
  %719 = vperm.xlu0 %718, %v49
  %v720 = vpop.permute.xlu0 %719
  %722 = vset.pattern.permute.xlu0 5
  %723 = vperm.xlu0 %722, %v50
  %v724 = vpop.permute.xlu0 %723
  %726 = vset.pattern.permute.xlu0 5
  %727 = vperm.xlu0 %726, %v51
  %v728 = vpop.permute.xlu0 %727
  %730 = vset.pattern.permute.xlu0 5
  %731 = vperm.xlu0 %730, %v52
  %v732 = vpop.permute.xlu0 %731
  %v734 = vmul.f32 %v704, %v390
  %v735 = vmul.f32 %v704, %v391
  %v736 = vmul.f32 %v708, %v392
  %v737 = vmul.f32 %v708, %v393
  %v738 = vmul.f32 %v712, %v394
  %v739 = vmul.f32 %v712, %v395
  %v740 = vmul.f32 %v716, %v396
  %v741 = vmul.f32 %v716, %v397
  %v742 = vmul.f32 %v720, %v398
  %v743 = vmul.f32 %v720, %v399
  %v744 = vmul.f32 %v724, %v400
  %v745 = vmul.f32 %v724, %v401
  %v746 = vmul.f32 %v728, %v402
  %v747 = vmul.f32 %v728, %v403
  %v748 = vmul.f32 %v732, %v404
  %v749 = vmul.f32 %v732, %v405
  %v750 = vadd.f32 %v686, %v734
  %v751 = vadd.f32 %v687, %v735
  %v752 = vadd.f32 %v688, %v736
  %v753 = vadd.f32 %v689, %v737
  %v754 = vadd.f32 %v690, %v738
  %v755 = vadd.f32 %v691, %v739
  %v756 = vadd.f32 %v692, %v740
  %v757 = vadd.f32 %v693, %v741
  %v758 = vadd.f32 %v694, %v742
  %v759 = vadd.f32 %v695, %v743
  %v760 = vadd.f32 %v696, %v744
  %v761 = vadd.f32 %v697, %v745
  %v762 = vadd.f32 %v698, %v746
  %v763 = vadd.f32 %v699, %v747
  %v764 = vadd.f32 %v700, %v748
  %v765 = vadd.f32 %v701, %v749
  %766 = vset.pattern.permute.xlu0 6
  %767 = vperm.xlu0 %766, %v45
  %v768 = vpop.permute.xlu0 %767
  %770 = vset.pattern.permute.xlu0 6
  %771 = vperm.xlu0 %770, %v46
  %v772 = vpop.permute.xlu0 %771
  %774 = vset.pattern.permute.xlu0 6
  %775 = vperm.xlu0 %774, %v47
  %v776 = vpop.permute.xlu0 %775
  %778 = vset.pattern.permute.xlu0 6
  %779 = vperm.xlu0 %778, %v48
  %v780 = vpop.permute.xlu0 %779
  %782 = vset.pattern.permute.xlu0 6
  %783 = vperm.xlu0 %782, %v49
  %v784 = vpop.permute.xlu0 %783
  %786 = vset.pattern.permute.xlu0 6
  %787 = vperm.xlu0 %786, %v50
  %v788 = vpop.permute.xlu0 %787
  %790 = vset.pattern.permute.xlu0 6
  %791 = vperm.xlu0 %790, %v51
  %v792 = vpop.permute.xlu0 %791
  %794 = vset.pattern.permute.xlu0 6
  %795 = vperm.xlu0 %794, %v52
  %v796 = vpop.permute.xlu0 %795
  %v798 = vmul.f32 %v768, %v314
  %v799 = vmul.f32 %v768, %v315
  %v800 = vmul.f32 %v772, %v316
  %v801 = vmul.f32 %v772, %v317
  %v802 = vmul.f32 %v776, %v318
  %v803 = vmul.f32 %v776, %v319
  %v804 = vmul.f32 %v780, %v320
  %v805 = vmul.f32 %v780, %v321
  %v806 = vmul.f32 %v784, %v322
  %v807 = vmul.f32 %v784, %v323
  %v808 = vmul.f32 %v788, %v324
  %v809 = vmul.f32 %v788, %v325
  %v810 = vmul.f32 %v792, %v326
  %v811 = vmul.f32 %v792, %v327
  %v812 = vmul.f32 %v796, %v328
  %v813 = vmul.f32 %v796, %v329
  %814 = vset.pattern.permute.xlu0 7
  %815 = vperm.xlu0 %814, %v45
  %v816 = vpop.permute.xlu0 %815
  %818 = vset.pattern.permute.xlu0 7
  %819 = vperm.xlu0 %818, %v46
  %v820 = vpop.permute.xlu0 %819
  %822 = vset.pattern.permute.xlu0 7
  %823 = vperm.xlu0 %822, %v47
  %v824 = vpop.permute.xlu0 %823
  %826 = vset.pattern.permute.xlu0 7
  %827 = vperm.xlu0 %826, %v48
  %v828 = vpop.permute.xlu0 %827
  %830 = vset.pattern.permute.xlu0 7
  %831 = vperm.xlu0 %830, %v49
  %v832 = vpop.permute.xlu0 %831
  %834 = vset.pattern.permute.xlu0 7
  %835 = vperm.xlu0 %834, %v50
  %v836 = vpop.permute.xlu0 %835
  %838 = vset.pattern.permute.xlu0 7
  %839 = vperm.xlu0 %838, %v51
  %v840 = vpop.permute.xlu0 %839
  %842 = vset.pattern.permute.xlu0 7
  %843 = vperm.xlu0 %842, %v52
  %v844 = vpop.permute.xlu0 %843
  %v846 = vmul.f32 %v816, %v236
  %v847 = vmul.f32 %v816, %v237
  %v848 = vmul.f32 %v820, %v238
  %v849 = vmul.f32 %v820, %v239
  %v850 = vmul.f32 %v824, %v240
  %v851 = vmul.f32 %v824, %v241
  %v852 = vmul.f32 %v828, %v242
  %v853 = vmul.f32 %v828, %v243
  %v854 = vmul.f32 %v832, %v244
  %v855 = vmul.f32 %v832, %v245
  %v856 = vmul.f32 %v836, %v246
  %v857 = vmul.f32 %v836, %v247
  %v858 = vmul.f32 %v840, %v248
  %v859 = vmul.f32 %v840, %v249
  %v860 = vmul.f32 %v844, %v250
  %v861 = vmul.f32 %v844, %v251
  %v862 = vadd.f32 %v798, %v846
  %v863 = vadd.f32 %v799, %v847
  %v864 = vadd.f32 %v800, %v848
  %v865 = vadd.f32 %v801, %v849
  %v866 = vadd.f32 %v802, %v850
  %v867 = vadd.f32 %v803, %v851
  %v868 = vadd.f32 %v804, %v852
  %v869 = vadd.f32 %v805, %v853
  %v870 = vadd.f32 %v806, %v854
  %v871 = vadd.f32 %v807, %v855
  %v872 = vadd.f32 %v808, %v856
  %v873 = vadd.f32 %v809, %v857
  %v874 = vadd.f32 %v810, %v858
  %v875 = vadd.f32 %v811, %v859
  %v876 = vadd.f32 %v812, %v860
  %v877 = vadd.f32 %v813, %v861
  %878 = vset.pattern.permute.xlu0 8
  %879 = vperm.xlu0 %878, %v45
  %v880 = vpop.permute.xlu0 %879
  %882 = vset.pattern.permute.xlu0 8
  %883 = vperm.xlu0 %882, %v46
  %v884 = vpop.permute.xlu0 %883
  %886 = vset.pattern.permute.xlu0 8
  %887 = vperm.xlu0 %886, %v47
  %v888 = vpop.permute.xlu0 %887
  %890 = vset.pattern.permute.xlu0 8
  %891 = vperm.xlu0 %890, %v48
  %v892 = vpop.permute.xlu0 %891
  %894 = vset.pattern.permute.xlu0 8
  %895 = vperm.xlu0 %894, %v49
  %v896 = vpop.permute.xlu0 %895
  %898 = vset.pattern.permute.xlu0 8
  %899 = vperm.xlu0 %898, %v50
  %v900 = vpop.permute.xlu0 %899
  %902 = vset.pattern.permute.xlu0 8
  %903 = vperm.xlu0 %902, %v51
  %v904 = vpop.permute.xlu0 %903
  %906 = vset.pattern.permute.xlu0 8
  %907 = vperm.xlu0 %906, %v52
  %v908 = vpop.permute.xlu0 %907
  %v910 = vmul.f32 %v880, %v390
  %v911 = vmul.f32 %v880, %v391
  %v912 = vmul.f32 %v884, %v392
  %v913 = vmul.f32 %v884, %v393
  %v914 = vmul.f32 %v888, %v394
  %v915 = vmul.f32 %v888, %v395
  %v916 = vmul.f32 %v892, %v396
  %v917 = vmul.f32 %v892, %v397
  %v918 = vmul.f32 %v896, %v398
  %v919 = vmul.f32 %v896, %v399
  %v920 = vmul.f32 %v900, %v400
  %v921 = vmul.f32 %v900, %v401
  %v922 = vmul.f32 %v904, %v402
  %v923 = vmul.f32 %v904, %v403
  %v924 = vmul.f32 %v908, %v404
  %v925 = vmul.f32 %v908, %v405
  %v926 = vadd.f32 %v862, %v910
  %v927 = vadd.f32 %v863, %v911
  %v928 = vadd.f32 %v864, %v912
  %v929 = vadd.f32 %v865, %v913
  %v930 = vadd.f32 %v866, %v914
  %v931 = vadd.f32 %v867, %v915
  %v932 = vadd.f32 %v868, %v916
  %v933 = vadd.f32 %v869, %v917
  %v934 = vadd.f32 %v870, %v918
  %v935 = vadd.f32 %v871, %v919
  %v936 = vadd.f32 %v872, %v920
  %v937 = vadd.f32 %v873, %v921
  %v938 = vadd.f32 %v874, %v922
  %v939 = vadd.f32 %v875, %v923
  %v940 = vadd.f32 %v876, %v924
  %v941 = vadd.f32 %v877, %v925
  %943 = vset.pattern.permute.xlu0 0
  %944 = vperm.xlu0 %943, %v53
  %v945 = vpop.permute.xlu0 %944
  %948 = vset.pattern.permute.xlu0 0
  %949 = vperm.xlu0 %948, %v54
  %v950 = vpop.permute.xlu0 %949
  %953 = vset.pattern.permute.xlu0 0
  %954 = vperm.xlu0 %953, %v55
  %v955 = vpop.permute.xlu0 %954
  %958 = vset.pattern.permute.xlu0 0
  %959 = vperm.xlu0 %958, %v56
  %v960 = vpop.permute.xlu0 %959
  %963 = vset.pattern.permute.xlu0 0
  %964 = vperm.xlu0 %963, %v57
  %v965 = vpop.permute.xlu0 %964
  %968 = vset.pattern.permute.xlu0 0
  %969 = vperm.xlu0 %968, %v58
  %v970 = vpop.permute.xlu0 %969
  %973 = vset.pattern.permute.xlu0 0
  %974 = vperm.xlu0 %973, %v59
  %v975 = vpop.permute.xlu0 %974
  %978 = vset.pattern.permute.xlu0 0
  %979 = vperm.xlu0 %978, %v60
  %v980 = vpop.permute.xlu0 %979
  %v982 = vadd.f32 %v945, %v750
  %v983 = vadd.f32 %v945, %v751
  %v984 = vadd.f32 %v950, %v752
  %v985 = vadd.f32 %v950, %v753
  %v986 = vadd.f32 %v955, %v754
  %v987 = vadd.f32 %v955, %v755
  %v988 = vadd.f32 %v960, %v756
  %v989 = vadd.f32 %v960, %v757
  %v990 = vadd.f32 %v965, %v758
  %v991 = vadd.f32 %v965, %v759
  %v992 = vadd.f32 %v970, %v760
  %v993 = vadd.f32 %v970, %v761
  %v994 = vadd.f32 %v975, %v762
  %v995 = vadd.f32 %v975, %v763
  %v996 = vadd.f32 %v980, %v764
  %v997 = vadd.f32 %v980, %v765
  %998 = vrot.lane.b32.xlu0 %v574, 16
  %v999 = vpop.permute.xlu0 %998
  %1000 = vrot.lane.b32.xlu0 %v576, 16
  %v1001 = vpop.permute.xlu0 %1000
  %1002 = vrot.lane.b32.xlu0 %v578, 16
  %v1003 = vpop.permute.xlu0 %1002
  %1004 = vrot.lane.b32.xlu0 %v580, 16
  %v1005 = vpop.permute.xlu0 %1004
  %1006 = vrot.lane.b32.xlu0 %v582, 16
  %v1007 = vpop.permute.xlu0 %1006
  %1008 = vrot.lane.b32.xlu0 %v584, 16
  %v1009 = vpop.permute.xlu0 %1008
  %1010 = vrot.lane.b32.xlu0 %v586, 16
  %v1011 = vpop.permute.xlu0 %1010
  %1012 = vrot.lane.b32.xlu0 %v588, 16
  %v1013 = vpop.permute.xlu0 %1012
  %1014 = vrot.lane.b32.xlu0 %v575, 16
  %v1015 = vpop.permute.xlu0 %1014
  %1016 = vrot.lane.b32.xlu0 %v577, 16
  %v1017 = vpop.permute.xlu0 %1016
  %1018 = vrot.lane.b32.xlu0 %v579, 16
  %v1019 = vpop.permute.xlu0 %1018
  %1020 = vrot.lane.b32.xlu0 %v581, 16
  %v1021 = vpop.permute.xlu0 %1020
  %1022 = vrot.lane.b32.xlu0 %v583, 16
  %v1023 = vpop.permute.xlu0 %1022
  %1024 = vrot.lane.b32.xlu0 %v585, 16
  %v1025 = vpop.permute.xlu0 %1024
  %1026 = vrot.lane.b32.xlu0 %v587, 16
  %v1027 = vpop.permute.xlu0 %1026
  %1028 = vrot.lane.b32.xlu0 %v589, 16
  %v1029 = vpop.permute.xlu0 %1028
  %vm1030 = vcmp.lt.s32.totalorder %v285, 16
  %v1031 = vsel %vm1030, %v999, %v1015
  %v1032 = vsel %vm1030, %v1001, %v1017
  %v1033 = vsel %vm1030, %v1003, %v1019
  %v1034 = vsel %vm1030, %v1005, %v1021
  %v1035 = vsel %vm1030, %v1007, %v1023
  %v1036 = vsel %vm1030, %v1009, %v1025
  %v1037 = vsel %vm1030, %v1011, %v1027
  %v1038 = vsel %vm1030, %v1013, %v1029
  %v1039 = vsel %vm1030, %v1015, %v999
  %v1040 = vsel %vm1030, %v1017, %v1001
  %v1041 = vsel %vm1030, %v1019, %v1003
  %v1042 = vsel %vm1030, %v1021, %v1005
  %v1043 = vsel %vm1030, %v1023, %v1007
  %v1044 = vsel %vm1030, %v1025, %v1009
  %v1045 = vsel %vm1030, %v1027, %v1011
  %v1046 = vsel %vm1030, %v1029, %v1013
  %v1048 = vlaneseq
  %v1049 = vshrl.u32 %v1048, 7
  %v1050 = vsub.s32 0, %v1049
  %v1051 = vrot.slane %v65, %v1050
  %v1052 = vlaneseq
  %v1053 = vshrl.u32 %v1052, 7
  %v1054 = vsub.s32 1, %v1053
  %v1055 = vrot.slane %v65, %v1054
  %v1058 = vmul.f32 %v1051, %v1039
  %v1059 = vmul.f32 %v1055, %v1031
  %v1060 = vmul.f32 %v1051, %v1040
  %v1061 = vmul.f32 %v1055, %v1032
  %v1062 = vmul.f32 %v1051, %v1041
  %v1063 = vmul.f32 %v1055, %v1033
  %v1064 = vmul.f32 %v1051, %v1042
  %v1065 = vmul.f32 %v1055, %v1034
  %v1066 = vmul.f32 %v1051, %v1043
  %v1067 = vmul.f32 %v1055, %v1035
  %v1068 = vmul.f32 %v1051, %v1044
  %v1069 = vmul.f32 %v1055, %v1036
  %v1070 = vmul.f32 %v1051, %v1045
  %v1071 = vmul.f32 %v1055, %v1037
  %v1072 = vmul.f32 %v1051, %v1046
  %v1073 = vmul.f32 %v1055, %v1038
  %v1074 = vadd.f32 %v982, %v1058
  %v1075 = vadd.f32 %v983, %v1059
  %v1076 = vadd.f32 %v984, %v1060
  %v1077 = vadd.f32 %v985, %v1061
  %v1078 = vadd.f32 %v986, %v1062
  %v1079 = vadd.f32 %v987, %v1063
  %v1080 = vadd.f32 %v988, %v1064
  %v1081 = vadd.f32 %v989, %v1065
  %v1082 = vadd.f32 %v990, %v1066
  %v1083 = vadd.f32 %v991, %v1067
  %v1084 = vadd.f32 %v992, %v1068
  %v1085 = vadd.f32 %v993, %v1069
  %v1086 = vadd.f32 %v994, %v1070
  %v1087 = vadd.f32 %v995, %v1071
  %v1088 = vadd.f32 %v996, %v1072
  %v1089 = vadd.f32 %v997, %v1073
  %1090 = vrot.lane.b32.xlu0 %v926, 112
  %v1091 = vpop.permute.xlu0 %1090
  %1092 = vrot.lane.b32.xlu0 %v928, 112
  %v1093 = vpop.permute.xlu0 %1092
  %1094 = vrot.lane.b32.xlu0 %v930, 112
  %v1095 = vpop.permute.xlu0 %1094
  %1096 = vrot.lane.b32.xlu0 %v932, 112
  %v1097 = vpop.permute.xlu0 %1096
  %1098 = vrot.lane.b32.xlu0 %v934, 112
  %v1099 = vpop.permute.xlu0 %1098
  %1100 = vrot.lane.b32.xlu0 %v936, 112
  %v1101 = vpop.permute.xlu0 %1100
  %1102 = vrot.lane.b32.xlu0 %v938, 112
  %v1103 = vpop.permute.xlu0 %1102
  %1104 = vrot.lane.b32.xlu0 %v940, 112
  %v1105 = vpop.permute.xlu0 %1104
  %1106 = vrot.lane.b32.xlu0 %v927, 112
  %v1107 = vpop.permute.xlu0 %1106
  %1108 = vrot.lane.b32.xlu0 %v929, 112
  %v1109 = vpop.permute.xlu0 %1108
  %1110 = vrot.lane.b32.xlu0 %v931, 112
  %v1111 = vpop.permute.xlu0 %1110
  %1112 = vrot.lane.b32.xlu0 %v933, 112
  %v1113 = vpop.permute.xlu0 %1112
  %1114 = vrot.lane.b32.xlu0 %v935, 112
  %v1115 = vpop.permute.xlu0 %1114
  %1116 = vrot.lane.b32.xlu0 %v937, 112
  %v1117 = vpop.permute.xlu0 %1116
  %1118 = vrot.lane.b32.xlu0 %v939, 112
  %v1119 = vpop.permute.xlu0 %1118
  %1120 = vrot.lane.b32.xlu0 %v941, 112
  %v1121 = vpop.permute.xlu0 %1120
  %vm1122 = vcmp.lt.s32.totalorder %v285, 112
  %v1123 = vsel %vm1122, %v1091, %v1107
  %v1124 = vsel %vm1122, %v1093, %v1109
  %v1125 = vsel %vm1122, %v1095, %v1111
  %v1126 = vsel %vm1122, %v1097, %v1113
  %v1127 = vsel %vm1122, %v1099, %v1115
  %v1128 = vsel %vm1122, %v1101, %v1117
  %v1129 = vsel %vm1122, %v1103, %v1119
  %v1130 = vsel %vm1122, %v1105, %v1121
  %v1131 = vsel %vm1122, %v1107, %v1091
  %v1132 = vsel %vm1122, %v1109, %v1093
  %v1133 = vsel %vm1122, %v1111, %v1095
  %v1134 = vsel %vm1122, %v1113, %v1097
  %v1135 = vsel %vm1122, %v1115, %v1099
  %v1136 = vsel %vm1122, %v1117, %v1101
  %v1137 = vsel %vm1122, %v1119, %v1103
  %v1138 = vsel %vm1122, %v1121, %v1105
  %v1140 = vlaneseq
  %v1141 = vshrl.u32 %v1140, 7
  %v1142 = vsub.s32 0, %v1141
  %v1143 = vrot.slane %v67, %v1142
  %v1144 = vlaneseq
  %v1145 = vshrl.u32 %v1144, 7
  %v1146 = vsub.s32 1, %v1145
  %v1147 = vrot.slane %v67, %v1146
  %v1150 = vmul.f32 %v1143, %v1123
  %v1151 = vmul.f32 %v1147, %v1131
  %v1152 = vmul.f32 %v1143, %v1124
  %v1153 = vmul.f32 %v1147, %v1132
  %v1154 = vmul.f32 %v1143, %v1125
  %v1155 = vmul.f32 %v1147, %v1133
  %v1156 = vmul.f32 %v1143, %v1126
  %v1157 = vmul.f32 %v1147, %v1134
  %v1158 = vmul.f32 %v1143, %v1127
  %v1159 = vmul.f32 %v1147, %v1135
  %v1160 = vmul.f32 %v1143, %v1128
  %v1161 = vmul.f32 %v1147, %v1136
  %v1162 = vmul.f32 %v1143, %v1129
  %v1163 = vmul.f32 %v1147, %v1137
  %v1164 = vmul.f32 %v1143, %v1130
  %v1165 = vmul.f32 %v1147, %v1138
  %v1166 = vadd.f32 %v1074, %v1150
  %v1167 = vadd.f32 %v1075, %v1151
  %v1168 = vadd.f32 %v1076, %v1152
  %v1169 = vadd.f32 %v1077, %v1153
  %v1170 = vadd.f32 %v1078, %v1154
  %v1171 = vadd.f32 %v1079, %v1155
  %v1172 = vadd.f32 %v1080, %v1156
  %v1173 = vadd.f32 %v1081, %v1157
  %v1174 = vadd.f32 %v1082, %v1158
  %v1175 = vadd.f32 %v1083, %v1159
  %v1176 = vadd.f32 %v1084, %v1160
  %v1177 = vadd.f32 %v1085, %v1161
  %v1178 = vadd.f32 %v1086, %v1162
  %v1179 = vadd.f32 %v1087, %v1163
  %v1180 = vadd.f32 %v1088, %v1164
  %v1181 = vadd.f32 %v1089, %v1165
  %v1182 = vmax.f32 %v1166, 0.0
  %v1183 = vmax.f32 %v1167, 0.0
  %v1184 = vmax.f32 %v1168, 0.0
  %v1185 = vmax.f32 %v1169, 0.0
  %v1186 = vmax.f32 %v1170, 0.0
  %v1187 = vmax.f32 %v1171, 0.0
  %v1188 = vmax.f32 %v1172, 0.0
  %v1189 = vmax.f32 %v1173, 0.0
  %v1190 = vmax.f32 %v1174, 0.0
  %v1191 = vmax.f32 %v1175, 0.0
  %v1192 = vmax.f32 %v1176, 0.0
  %v1193 = vmax.f32 %v1177, 0.0
  %v1194 = vmax.f32 %v1178, 0.0
  %v1195 = vmax.f32 %v1179, 0.0
  %v1196 = vmax.f32 %v1180, 0.0
  %v1197 = vmax.f32 %v1181, 0.0
  %v1198 = vmin.f32 %v1182, 6.0
  %v1199 = vmin.f32 %v1183, 6.0
  %v1200 = vmin.f32 %v1184, 6.0
  %v1201 = vmin.f32 %v1185, 6.0
  %v1202 = vmin.f32 %v1186, 6.0
  %v1203 = vmin.f32 %v1187, 6.0
  %v1204 = vmin.f32 %v1188, 6.0
  %v1205 = vmin.f32 %v1189, 6.0
  %v1206 = vmin.f32 %v1190, 6.0
  %v1207 = vmin.f32 %v1191, 6.0
  %v1208 = vmin.f32 %v1192, 6.0
  %v1209 = vmin.f32 %v1193, 6.0
  %v1210 = vmin.f32 %v1194, 6.0
  %v1211 = vmin.f32 %v1195, 6.0
  %v1212 = vmin.f32 %v1196, 6.0
  %v1213 = vmin.f32 %v1197, 6.0
  %v1214 = vpack.c.bf16 %v1200, %v1198
  %v1215 = vpack.c.bf16 %v1201, %v1199
  %v1216 = vpack.c.bf16 %v1204, %v1202
  %v1217 = vpack.c.bf16 %v1205, %v1203
  %v1218 = vpack.c.bf16 %v1208, %v1206
  %v1219 = vpack.c.bf16 %v1209, %v1207
  %v1220 = vpack.c.bf16 %v1212, %v1210
  %v1221 = vpack.c.bf16 %v1213, %v1211
  %v1224 = vunpack.c.l.b16 %v35
  %v1225 = vunpack.c.l.b16 %v36
  %v1226 = vpack.c.b16 %v1225, %v1224
  %vm1227 = vcmask 523264
  %v1229 = vsel %vm1227, %v1226, 0
  %1231 = vmatprep.subr.bf16.mxu0 %v1215
  %1232 = vmatpush1.bf16.msra.mxu0 %v1214
  %1233 = vmatprep.subr.bf16.mxu0 %v1217
  %1234 = vmatpush1.bf16.msra.mxu0 %v1216
  %1235 = vmatprep.subr.bf16.mxu0 %v1219
  %1236 = vmatpush1.bf16.msra.mxu0 %v1218
  %1237 = vmatprep.subr.bf16.mxu0 %v1221
  %1238 = vmatpush1.bf16.msra.mxu0 %v1220
  %1239 = vmatprep.subr.bf16.mxu0 0
  %1240 = vmatpush1.bf16.msra.mxu0 0
  %1241 = vmatprep.subr.bf16.mxu0 0
  %1242 = vmatpush1.bf16.msra.mxu0 0
  %1243 = vmatprep.subr.bf16.mxu0 0
  %1244 = vmatpush1.bf16.msra.mxu0 0
  %1245 = vmatprep.subr.bf16.mxu0 0
  %1246 = vmatpush1.bf16.msra.mxu0 0
  %1247 = vmatprep.subr.bf16.mxu0 0
  %1248 = vmatpush1.bf16.msra.mxu0 0
  %1249 = vmatprep.subr.bf16.mxu0 0
  %1250 = vmatpush1.bf16.msra.mxu0 0
  %1251 = vmatprep.subr.bf16.mxu0 0
  %1252 = vmatpush1.bf16.msra.mxu0 0
  %1253 = vmatprep.subr.bf16.mxu0 0
  %1254 = vmatpush1.bf16.msra.mxu0 0
  %1255 = vmatprep.subr.bf16.mxu0 0
  %1256 = vmatpush1.bf16.msra.mxu0 0
  %1257 = vmatprep.subr.bf16.mxu0 0
  %1258 = vmatpush1.bf16.msra.mxu0 0
  %1259 = vmatprep.subr.bf16.mxu0 0
  %1260 = vmatpush1.bf16.msra.mxu0 0
  %1261 = vmatprep.subr.bf16.mxu0 0
  %1262 = vmatpush1.bf16.msra.mxu0 0
  %1263 = vmatprep.mubr.bf16.mxu0 0
  %1264 = vmatmul.mubr.bf16.gmra.mrb[0].mxu0 %v1229
  %v1265 = vpop.f32.mrb[0].mxu0
  %v1266 = vadd.f32 0.0, %v1265
  %v1267 = vpop.f32.mrb[0].mxu0
  %v1268 = vadd.f32 0.0, %v1267
  %v1269 = vpop.f32.mrb[0].mxu0
  %v1270 = vadd.f32 0.0, %v1269
  %v1271 = vpop.f32.mrb[0].mxu0
  %v1272 = vadd.f32 0.0, %v1271
  %1273 = vdwg.mxu0
  %v1274 = vadd.f32 %v68, %v1266
  %v1275 = vadd.f32 %v69, %v1268
  %v1276 = vadd.f32 %v70, %v1270
  %v1277 = vadd.f32 %v71, %v1272
  %1278 = vst [vmem:[%s7] sm:$0xff] %v1274
  %1279 = vst [vmem:[%s7 + $0x8] sm:$0xff] %v1275
  %1280 = vst [vmem:[%s7 + $0x10] sm:$0xff] %v1276
  %1281 = vst [vmem:[%s7 + $0x18] sm:$0xff] %v1277
  %s1282 = scalar_lea.vmem %s0, 32
  %v1283 = vld [vmem:[%s1282] sm:$0xff]
  %v1284 = vld [vmem:[%s1282 + $0x8] sm:$0xff]
  %v1285 = vld [vmem:[%s1282 + $0x10] sm:$0xff]
  %v1286 = vld [vmem:[%s1282 + $0x18] sm:$0xff]
  %v1287 = vpack.c.bf16 %v1285, %v1283
  %v1288 = vpack.c.bf16 %v1286, %v1284
  %1289 = vmatprep.subr.bf16.mxu0 %v1288
  %1290 = vmatpush1.bf16.msra.mxu0 %v1287
  %1291 = vmatprep.subr.bf16.mxu0 0
  %1292 = vmatpush1.bf16.msra.mxu0 0
  %1293 = vmatprep.subr.bf16.mxu0 0
  %1294 = vmatpush1.bf16.msra.mxu0 0
  %1295 = vmatprep.subr.bf16.mxu0 0
  %1296 = vmatpush1.bf16.msra.mxu0 0
  %1297 = vmatprep.subr.bf16.mxu0 0
  %1298 = vmatpush1.bf16.msra.mxu0 0
  %1299 = vmatprep.subr.bf16.mxu0 0
  %1300 = vmatpush1.bf16.msra.mxu0 0
  %1301 = vmatprep.subr.bf16.mxu0 0
  %1302 = vmatpush1.bf16.msra.mxu0 0
  %1303 = vmatprep.subr.bf16.mxu0 0
  %1304 = vmatpush1.bf16.msra.mxu0 0
  %1305 = vmatprep.subr.bf16.mxu0 0
  %1306 = vmatpush1.bf16.msra.mxu0 0
  %1307 = vmatprep.subr.bf16.mxu0 0
  %1308 = vmatpush1.bf16.msra.mxu0 0
  %1309 = vmatprep.subr.bf16.mxu0 0
  %1310 = vmatpush1.bf16.msra.mxu0 0
  %1311 = vmatprep.subr.bf16.mxu0 0
  %1312 = vmatpush1.bf16.msra.mxu0 0
  %1313 = vmatprep.subr.bf16.mxu0 0
  %1314 = vmatpush1.bf16.msra.mxu0 0
  %1315 = vmatprep.subr.bf16.mxu0 0
  %1316 = vmatpush1.bf16.msra.mxu0 0
  %1317 = vmatprep.subr.bf16.mxu0 0
  %1318 = vmatpush1.bf16.msra.mxu0 0
  %1319 = vmatprep.subr.bf16.mxu0 0
  %1320 = vmatpush1.bf16.msra.mxu0 0
  %1321 = vmatprep.mubr.bf16.mxu0 0
  %1322 = vmatmul.mubr.bf16.gmra.mrb[0].mxu0 %v136
  %v1323 = vpop.f32.mrb[0].mxu0
  %v1324 = vadd.f32 %v77, %v1323
  %v1325 = vpop.f32.mrb[0].mxu0
  %v1326 = vadd.f32 %v77, %v1325
  %v1327 = vpop.f32.mrb[0].mxu0
  %v1328 = vadd.f32 %v82, %v1327
  %v1329 = vpop.f32.mrb[0].mxu0
  %v1330 = vadd.f32 %v82, %v1329
  %1331 = vmatprep.mubr.bf16.mxu0 0
  %1332 = vmatmul.mubr.bf16.gmra.mrb[0].mxu0 %v139
  %v1333 = vpop.f32.mrb[0].mxu0
  %v1334 = vadd.f32 %v87, %v1333
  %v1335 = vpop.f32.mrb[0].mxu0
  %v1336 = vadd.f32 %v87, %v1335
  %v1337 = vpop.f32.mrb[0].mxu0
  %v1338 = vadd.f32 %v92, %v1337
  %v1339 = vpop.f32.mrb[0].mxu0
  %v1340 = vadd.f32 %v92, %v1339
  %1341 = vmatprep.mubr.bf16.mxu0 0
  %1342 = vmatmul.mubr.bf16.gmra.mrb[0].mxu0 %v142
  %v1343 = vpop.f32.mrb[0].mxu0
  %v1344 = vadd.f32 %v97, %v1343
  %v1345 = vpop.f32.mrb[0].mxu0
  %v1346 = vadd.f32 %v97, %v1345
  %v1347 = vpop.f32.mrb[0].mxu0
  %v1348 = vadd.f32 %v102, %v1347
  %v1349 = vpop.f32.mrb[0].mxu0
  %v1350 = vadd.f32 %v102, %v1349
  %1351 = vmatprep.mubr.bf16.mxu0 0
  %1352 = vmatmul.mubr.bf16.gmra.mrb[0].mxu0 %v145
  %v1353 = vpop.f32.mrb[0].mxu0
  %v1354 = vadd.f32 %v107, %v1353
  %v1355 = vpop.f32.mrb[0].mxu0
  %v1356 = vadd.f32 %v107, %v1355
  %v1357 = vpop.f32.mrb[0].mxu0
  %v1358 = vadd.f32 %v112, %v1357
  %v1359 = vpop.f32.mrb[0].mxu0
  %v1360 = vadd.f32 %v112, %v1359
  %1361 = vdwg.mxu0
  %v1362 = vmax.f32 %v1324, 0.0
  %v1363 = vmax.f32 %v1326, 0.0
  %v1364 = vmax.f32 %v1328, 0.0
  %v1365 = vmax.f32 %v1330, 0.0
  %v1366 = vmax.f32 %v1334, 0.0
  %v1367 = vmax.f32 %v1336, 0.0
  %v1368 = vmax.f32 %v1338, 0.0
  %v1369 = vmax.f32 %v1340, 0.0
  %v1370 = vmax.f32 %v1344, 0.0
  %v1371 = vmax.f32 %v1346, 0.0
  %v1372 = vmax.f32 %v1348, 0.0
  %v1373 = vmax.f32 %v1350, 0.0
  %v1374 = vmax.f32 %v1354, 0.0
  %v1375 = vmax.f32 %v1356, 0.0
  %v1376 = vmax.f32 %v1358, 0.0
  %v1377 = vmax.f32 %v1360, 0.0
  %v1378 = vmin.f32 %v1362, 6.0
  %v1379 = vmin.f32 %v1363, 6.0
  %v1380 = vmin.f32 %v1364, 6.0
  %v1381 = vmin.f32 %v1365, 6.0
  %v1382 = vmin.f32 %v1366, 6.0
  %v1383 = vmin.f32 %v1367, 6.0
  %v1384 = vmin.f32 %v1368, 6.0
  %v1385 = vmin.f32 %v1369, 6.0
  %v1386 = vmin.f32 %v1370, 6.0
  %v1387 = vmin.f32 %v1371, 6.0
  %v1388 = vmin.f32 %v1372, 6.0
  %v1389 = vmin.f32 %v1373, 6.0
  %v1390 = vmin.f32 %v1374, 6.0
  %v1391 = vmin.f32 %v1375, 6.0
  %v1392 = vmin.f32 %v1376, 6.0
  %v1393 = vmin.f32 %v1377, 6.0
  %1394 = vrot.lane.b32.xlu0 %v1378, 1
  %v1395 = vpop.permute.xlu0 %1394
  %1396 = vrot.lane.b32.xlu0 %v1380, 1
  %v1397 = vpop.permute.xlu0 %1396
  %1398 = vrot.lane.b32.xlu0 %v1382, 1
  %v1399 = vpop.permute.xlu0 %1398
  %1400 = vrot.lane.b32.xlu0 %v1384, 1
  %v1401 = vpop.permute.xlu0 %1400
  %1402 = vrot.lane.b32.xlu0 %v1386, 1
  %v1403 = vpop.permute.xlu0 %1402
  %1404 = vrot.lane.b32.xlu0 %v1388, 1
  %v1405 = vpop.permute.xlu0 %1404
  %1406 = vrot.lane.b32.xlu0 %v1390, 1
  %v1407 = vpop.permute.xlu0 %1406
  %1408 = vrot.lane.b32.xlu0 %v1392, 1
  %v1409 = vpop.permute.xlu0 %1408
  %1410 = vrot.lane.b32.xlu0 %v1379, 1
  %v1411 = vpop.permute.xlu0 %1410
  %1412 = vrot.lane.b32.xlu0 %v1381, 1
  %v1413 = vpop.permute.xlu0 %1412
  %1414 = vrot.lane.b32.xlu0 %v1383, 1
  %v1415 = vpop.permute.xlu0 %1414
  %1416 = vrot.lane.b32.xlu0 %v1385, 1
  %v1417 = vpop.permute.xlu0 %1416
  %1418 = vrot.lane.b32.xlu0 %v1387, 1
  %v1419 = vpop.permute.xlu0 %1418
  %1420 = vrot.lane.b32.xlu0 %v1389, 1
  %v1421 = vpop.permute.xlu0 %1420
  %1422 = vrot.lane.b32.xlu0 %v1391, 1
  %v1423 = vpop.permute.xlu0 %1422
  %1424 = vrot.lane.b32.xlu0 %v1393, 1
  %v1425 = vpop.permute.xlu0 %1424
  %v1426 = vsel %vm286, %v1395, %v1411
  %v1427 = vsel %vm286, %v1397, %v1413
  %v1428 = vsel %vm286, %v1399, %v1415
  %v1429 = vsel %vm286, %v1401, %v1417
  %v1430 = vsel %vm286, %v1403, %v1419
  %v1431 = vsel %vm286, %v1405, %v1421
  %v1432 = vsel %vm286, %v1407, %v1423
  %v1433 = vsel %vm286, %v1409, %v1425
  %v1434 = vsel %vm286, %v1411, %v1395
  %v1435 = vsel %vm286, %v1413, %v1397
  %v1436 = vsel %vm286, %v1415, %v1399
  %v1437 = vsel %vm286, %v1417, %v1401
  %v1438 = vsel %vm286, %v1419, %v1403
  %v1439 = vsel %vm286, %v1421, %v1405
  %v1440 = vsel %vm286, %v1423, %v1407
  %v1441 = vsel %vm286, %v1425, %v1409
  %v1442 = vmul.f32 %v1434, %v307
  %v1443 = vmul.f32 %v1426, %v311
  %v1444 = vmul.f32 %v1435, %v307
  %v1445 = vmul.f32 %v1427, %v311
  %v1446 = vmul.f32 %v1436, %v307
  %v1447 = vmul.f32 %v1428, %v311
  %v1448 = vmul.f32 %v1437, %v307
  %v1449 = vmul.f32 %v1429, %v311
  %v1450 = vmul.f32 %v1438, %v307
  %v1451 = vmul.f32 %v1430, %v311
  %v1452 = vmul.f32 %v1439, %v307
  %v1453 = vmul.f32 %v1431, %v311
  %v1454 = vmul.f32 %v1440, %v307
  %v1455 = vmul.f32 %v1432, %v311
  %v1456 = vmul.f32 %v1441, %v307
  %v1457 = vmul.f32 %v1433, %v311
  %1458 = vrot.lane.b32.xlu0 %v1378, 127
  %v1459 = vpop.permute.xlu0 %1458
  %1460 = vrot.lane.b32.xlu0 %v1380, 127
  %v1461 = vpop.permute.xlu0 %1460
  %1462 = vrot.lane.b32.xlu0 %v1382, 127
  %v1463 = vpop.permute.xlu0 %1462
  %1464 = vrot.lane.b32.xlu0 %v1384, 127
  %v1465 = vpop.permute.xlu0 %1464
  %1466 = vrot.lane.b32.xlu0 %v1386, 127
  %v1467 = vpop.permute.xlu0 %1466
  %1468 = vrot.lane.b32.xlu0 %v1388, 127
  %v1469 = vpop.permute.xlu0 %1468
  %1470 = vrot.lane.b32.xlu0 %v1390, 127
  %v1471 = vpop.permute.xlu0 %1470
  %1472 = vrot.lane.b32.xlu0 %v1392, 127
  %v1473 = vpop.permute.xlu0 %1472
  %1474 = vrot.lane.b32.xlu0 %v1379, 127
  %v1475 = vpop.permute.xlu0 %1474
  %1476 = vrot.lane.b32.xlu0 %v1381, 127
  %v1477 = vpop.permute.xlu0 %1476
  %1478 = vrot.lane.b32.xlu0 %v1383, 127
  %v1479 = vpop.permute.xlu0 %1478
  %1480 = vrot.lane.b32.xlu0 %v1385, 127
  %v1481 = vpop.permute.xlu0 %1480
  %1482 = vrot.lane.b32.xlu0 %v1387, 127
  %v1483 = vpop.permute.xlu0 %1482
  %1484 = vrot.lane.b32.xlu0 %v1389, 127
  %v1485 = vpop.permute.xlu0 %1484
  %1486 = vrot.lane.b32.xlu0 %v1391, 127
  %v1487 = vpop.permute.xlu0 %1486
  %1488 = vrot.lane.b32.xlu0 %v1393, 127
  %v1489 = vpop.permute.xlu0 %1488
  %v1490 = vsel %vm362, %v1459, %v1475
  %v1491 = vsel %vm362, %v1461, %v1477
  %v1492 = vsel %vm362, %v1463, %v1479
  %v1493 = vsel %vm362, %v1465, %v1481
  %v1494 = vsel %vm362, %v1467, %v1483
  %v1495 = vsel %vm362, %v1469, %v1485
  %v1496 = vsel %vm362, %v1471, %v1487
  %v1497 = vsel %vm362, %v1473, %v1489
  %v1498 = vsel %vm362, %v1475, %v1459
  %v1499 = vsel %vm362, %v1477, %v1461
  %v1500 = vsel %vm362, %v1479, %v1463
  %v1501 = vsel %vm362, %v1481, %v1465
  %v1502 = vsel %vm362, %v1483, %v1467
  %v1503 = vsel %vm362, %v1485, %v1469
  %v1504 = vsel %vm362, %v1487, %v1471
  %v1505 = vsel %vm362, %v1489, %v1473
  %v1506 = vmul.f32 %v1490, %v383
  %v1507 = vmul.f32 %v1498, %v387
  %v1508 = vmul.f32 %v1491, %v383
  %v1509 = vmul.f32 %v1499, %v387
  %v1510 = vmul.f32 %v1492, %v383
  %v1511 = vmul.f32 %v1500, %v387
  %v1512 = vmul.f32 %v1493, %v383
  %v1513 = vmul.f32 %v1501, %v387
  %v1514 = vmul.f32 %v1494, %v383
  %v1515 = vmul.f32 %v1502, %v387
  %v1516 = vmul.f32 %v1495, %v383
  %v1517 = vmul.f32 %v1503, %v387
  %v1518 = vmul.f32 %v1496, %v383
  %v1519 = vmul.f32 %v1504, %v387
  %v1520 = vmul.f32 %v1497, %v383
  %v1521 = vmul.f32 %v1505, %v387
  %v1522 = vmul.f32 %v409, %v1442
  %v1523 = vmul.f32 %v409, %v1443
  %v1524 = vmul.f32 %v414, %v1444
  %v1525 = vmul.f32 %v414, %v1445
  %v1526 = vmul.f32 %v419, %v1446
  %v1527 = vmul.f32 %v419, %v1447
  %v1528 = vmul.f32 %v424, %v1448
  %v1529 = vmul.f32 %v424, %v1449
  %v1530 = vmul.f32 %v429, %v1450
  %v1531 = vmul.f32 %v429, %v1451
  %v1532 = vmul.f32 %v434, %v1452
  %v1533 = vmul.f32 %v434, %v1453
  %v1534 = vmul.f32 %v439, %v1454
  %v1535 = vmul.f32 %v439, %v1455
  %v1536 = vmul.f32 %v444, %v1456
  %v1537 = vmul.f32 %v444, %v1457
  %v1538 = vmul.f32 %v464, %v1378
  %v1539 = vmul.f32 %v464, %v1379
  %v1540 = vmul.f32 %v468, %v1380
  %v1541 = vmul.f32 %v468, %v1381
  %v1542 = vmul.f32 %v472, %v1382
  %v1543 = vmul.f32 %v472, %v1383
  %v1544 = vmul.f32 %v476, %v1384
  %v1545 = vmul.f32 %v476, %v1385
  %v1546 = vmul.f32 %v480, %v1386
  %v1547 = vmul.f32 %v480, %v1387
  %v1548 = vmul.f32 %v484, %v1388
  %v1549 = vmul.f32 %v484, %v1389
  %v1550 = vmul.f32 %v488, %v1390
  %v1551 = vmul.f32 %v488, %v1391
  %v1552 = vmul.f32 %v492, %v1392
  %v1553 = vmul.f32 %v492, %v1393
  %v1554 = vadd.f32 %v1522, %v1538
  %v1555 = vadd.f32 %v1523, %v1539
  %v1556 = vadd.f32 %v1524, %v1540
  %v1557 = vadd.f32 %v1525, %v1541
  %v1558 = vadd.f32 %v1526, %v1542
  %v1559 = vadd.f32 %v1527, %v1543
  %v1560 = vadd.f32 %v1528, %v1544
  %v1561 = vadd.f32 %v1529, %v1545
  %v1562 = vadd.f32 %v1530, %v1546
  %v1563 = vadd.f32 %v1531, %v1547
  %v1564 = vadd.f32 %v1532, %v1548
  %v1565 = vadd.f32 %v1533, %v1549
  %v1566 = vadd.f32 %v1534, %v1550
  %v1567 = vadd.f32 %v1535, %v1551
  %v1568 = vadd.f32 %v1536, %v1552
  %v1569 = vadd.f32 %v1537, %v1553
  %v1570 = vmul.f32 %v528, %v1506
  %v1571 = vmul.f32 %v528, %v1507
  %v1572 = vmul.f32 %v532, %v1508
  %v1573 = vmul.f32 %v532, %v1509
  %v1574 = vmul.f32 %v536, %v1510
  %v1575 = vmul.f32 %v536, %v1511
  %v1576 = vmul.f32 %v540, %v1512
  %v1577 = vmul.f32 %v540, %v1513
  %v1578 = vmul.f32 %v544, %v1514
  %v1579 = vmul.f32 %v544, %v1515
  %v1580 = vmul.f32 %v548, %v1516
  %v1581 = vmul.f32 %v548, %v1517
  %v1582 = vmul.f32 %v552, %v1518
  %v1583 = vmul.f32 %v552, %v1519
  %v1584 = vmul.f32 %v556, %v1520
  %v1585 = vmul.f32 %v556, %v1521
  %v1586 = vadd.f32 %v1554, %v1570
  %v1587 = vadd.f32 %v1555, %v1571
  %v1588 = vadd.f32 %v1556, %v1572
  %v1589 = vadd.f32 %v1557, %v1573
  %v1590 = vadd.f32 %v1558, %v1574
  %v1591 = vadd.f32 %v1559, %v1575
  %v1592 = vadd.f32 %v1560, %v1576
  %v1593 = vadd.f32 %v1561, %v1577
  %v1594 = vadd.f32 %v1562, %v1578
  %v1595 = vadd.f32 %v1563, %v1579
  %v1596 = vadd.f32 %v1564, %v1580
  %v1597 = vadd.f32 %v1565, %v1581
  %v1598 = vadd.f32 %v1566, %v1582
  %v1599 = vadd.f32 %v1567, %v1583
  %v1600 = vadd.f32 %v1568, %v1584
  %v1601 = vadd.f32 %v1569, %v1585
  %v1602 = vmul.f32 %v592, %v1442
  %v1603 = vmul.f32 %v592, %v1443
  %v1604 = vmul.f32 %v596, %v1444
  %v1605 = vmul.f32 %v596, %v1445
  %v1606 = vmul.f32 %v600, %v1446
  %v1607 = vmul.f32 %v600, %v1447
  %v1608 = vmul.f32 %v604, %v1448
  %v1609 = vmul.f32 %v604, %v1449
  %v1610 = vmul.f32 %v608, %v1450
  %v1611 = vmul.f32 %v608, %v1451
  %v1612 = vmul.f32 %v612, %v1452
  %v1613 = vmul.f32 %v612, %v1453
  %v1614 = vmul.f32 %v616, %v1454
  %v1615 = vmul.f32 %v616, %v1455
  %v1616 = vmul.f32 %v620, %v1456
  %v1617 = vmul.f32 %v620, %v1457
  %v1618 = vmul.f32 %v640, %v1378
  %v1619 = vmul.f32 %v640, %v1379
  %v1620 = vmul.f32 %v644, %v1380
  %v1621 = vmul.f32 %v644, %v1381
  %v1622 = vmul.f32 %v648, %v1382
  %v1623 = vmul.f32 %v648, %v1383
  %v1624 = vmul.f32 %v652, %v1384
  %v1625 = vmul.f32 %v652, %v1385
  %v1626 = vmul.f32 %v656, %v1386
  %v1627 = vmul.f32 %v656, %v1387
  %v1628 = vmul.f32 %v660, %v1388
  %v1629 = vmul.f32 %v660, %v1389
  %v1630 = vmul.f32 %v664, %v1390
  %v1631 = vmul.f32 %v664, %v1391
  %v1632 = vmul.f32 %v668, %v1392
  %v1633 = vmul.f32 %v668, %v1393
  %v1634 = vadd.f32 %v1602, %v1618
  %v1635 = vadd.f32 %v1603, %v1619
  %v1636 = vadd.f32 %v1604, %v1620
  %v1637 = vadd.f32 %v1605, %v1621
  %v1638 = vadd.f32 %v1606, %v1622
  %v1639 = vadd.f32 %v1607, %v1623
  %v1640 = vadd.f32 %v1608, %v1624
  %v1641 = vadd.f32 %v1609, %v1625
  %v1642 = vadd.f32 %v1610, %v1626
  %v1643 = vadd.f32 %v1611, %v1627
  %v1644 = vadd.f32 %v1612, %v1628
  %v1645 = vadd.f32 %v1613, %v1629
  %v1646 = vadd.f32 %v1614, %v1630
  %v1647 = vadd.f32 %v1615, %v1631
  %v1648 = vadd.f32 %v1616, %v1632
  %v1649 = vadd.f32 %v1617, %v1633
  %v1650 = vmul.f32 %v704, %v1506
  %v1651 = vmul.f32 %v704, %v1507
  %v1652 = vmul.f32 %v708, %v1508
  %v1653 = vmul.f32 %v708, %v1509
  %v1654 = vmul.f32 %v712, %v1510
  %v1655 = vmul.f32 %v712, %v1511
  %v1656 = vmul.f32 %v716, %v1512
  %v1657 = vmul.f32 %v716, %v1513
  %v1658 = vmul.f32 %v720, %v1514
  %v1659 = vmul.f32 %v720, %v1515
  %v1660 = vmul.f32 %v724, %v1516
  %v1661 = vmul.f32 %v724, %v1517
  %v1662 = vmul.f32 %v728, %v1518
  %v1663 = vmul.f32 %v728, %v1519
  %v1664 = vmul.f32 %v732, %v1520
  %v1665 = vmul.f32 %v732, %v1521
  %v1666 = vadd.f32 %v1634, %v1650
  %v1667 = vadd.f32 %v1635, %v1651
  %v1668 = vadd.f32 %v1636, %v1652
  %v1669 = vadd.f32 %v1637, %v1653
  %v1670 = vadd.f32 %v1638, %v1654
  %v1671 = vadd.f32 %v1639, %v1655
  %v1672 = vadd.f32 %v1640, %v1656
  %v1673 = vadd.f32 %v1641, %v1657
  %v1674 = vadd.f32 %v1642, %v1658
  %v1675 = vadd.f32 %v1643, %v1659
  %v1676 = vadd.f32 %v1644, %v1660
  %v1677 = vadd.f32 %v1645, %v1661
  %v1678 = vadd.f32 %v1646, %v1662
  %v1679 = vadd.f32 %v1647, %v1663
  %v1680 = vadd.f32 %v1648, %v1664
  %v1681 = vadd.f32 %v1649, %v1665
  %v1682 = vmul.f32 %v768, %v1442
  %v1683 = vmul.f32 %v768, %v1443
  %v1684 = vmul.f32 %v772, %v1444
  %v1685 = vmul.f32 %v772, %v1445
  %v1686 = vmul.f32 %v776, %v1446
  %v1687 = vmul.f32 %v776, %v1447
  %v1688 = vmul.f32 %v780, %v1448
  %v1689 = vmul.f32 %v780, %v1449
  %v1690 = vmul.f32 %v784, %v1450
  %v1691 = vmul.f32 %v784, %v1451
  %v1692 = vmul.f32 %v788, %v1452
  %v1693 = vmul.f32 %v788, %v1453
  %v1694 = vmul.f32 %v792, %v1454
  %v1695 = vmul.f32 %v792, %v1455
  %v1696 = vmul.f32 %v796, %v1456
  %v1697 = vmul.f32 %v796, %v1457
  %v1698 = vmul.f32 %v816, %v1378
  %v1699 = vmul.f32 %v816, %v1379
  %v1700 = vmul.f32 %v820, %v1380
  %v1701 = vmul.f32 %v820, %v1381
  %v1702 = vmul.f32 %v824, %v1382
  %v1703 = vmul.f32 %v824, %v1383
  %v1704 = vmul.f32 %v828, %v1384
  %v1705 = vmul.f32 %v828, %v1385
  %v1706 = vmul.f32 %v832, %v1386
  %v1707 = vmul.f32 %v832, %v1387
  %v1708 = vmul.f32 %v836, %v1388
  %v1709 = vmul.f32 %v836, %v1389
  %v1710 = vmul.f32 %v840, %v1390
  %v1711 = vmul.f32 %v840, %v1391
  %v1712 = vmul.f32 %v844, %v1392
  %v1713 = vmul.f32 %v844, %v1393
  %v1714 = vadd.f32 %v1682, %v1698
  %v1715 = vadd.f32 %v1683, %v1699
  %v1716 = vadd.f32 %v1684, %v1700
  %v1717 = vadd.f32 %v1685, %v1701
  %v1718 = vadd.f32 %v1686, %v1702
  %v1719 = vadd.f32 %v1687, %v1703
  %v1720 = vadd.f32 %v1688, %v1704
  %v1721 = vadd.f32 %v1689, %v1705
  %v1722 = vadd.f32 %v1690, %v1706
  %v1723 = vadd.f32 %v1691, %v1707
  %v1724 = vadd.f32 %v1692, %v1708
  %v1725 = vadd.f32 %v1693, %v1709
  %v1726 = vadd.f32 %v1694, %v1710
  %v1727 = vadd.f32 %v1695, %v1711
  %v1728 = vadd.f32 %v1696, %v1712
  %v1729 = vadd.f32 %v1697, %v1713
  %v1730 = vmul.f32 %v880, %v1506
  %v1731 = vmul.f32 %v880, %v1507
  %v1732 = vmul.f32 %v884, %v1508
  %v1733 = vmul.f32 %v884, %v1509
  %v1734 = vmul.f32 %v888, %v1510
  %v1735 = vmul.f32 %v888, %v1511
  %v1736 = vmul.f32 %v892, %v1512
  %v1737 = vmul.f32 %v892, %v1513
  %v1738 = vmul.f32 %v896, %v1514
  %v1739 = vmul.f32 %v896, %v1515
  %v1740 = vmul.f32 %v900, %v1516
  %v1741 = vmul.f32 %v900, %v1517
  %v1742 = vmul.f32 %v904, %v1518
  %v1743 = vmul.f32 %v904, %v1519
  %v1744 = vmul.f32 %v908, %v1520
  %v1745 = vmul.f32 %v908, %v1521
  %v1746 = vadd.f32 %v1714, %v1730
  %v1747 = vadd.f32 %v1715, %v1731
  %v1748 = vadd.f32 %v1716, %v1732
  %v1749 = vadd.f32 %v1717, %v1733
  %v1750 = vadd.f32 %v1718, %v1734
  %v1751 = vadd.f32 %v1719, %v1735
  %v1752 = vadd.f32 %v1720, %v1736
  %v1753 = vadd.f32 %v1721, %v1737
  %v1754 = vadd.f32 %v1722, %v1738
  %v1755 = vadd.f32 %v1723, %v1739
  %v1756 = vadd.f32 %v1724, %v1740
  %v1757 = vadd.f32 %v1725, %v1741
  %v1758 = vadd.f32 %v1726, %v1742
  %v1759 = vadd.f32 %v1727, %v1743
  %v1760 = vadd.f32 %v1728, %v1744
  %v1761 = vadd.f32 %v1729, %v1745
  %v1762 = vadd.f32 %v945, %v1666
  %v1763 = vadd.f32 %v945, %v1667
  %v1764 = vadd.f32 %v950, %v1668
  %v1765 = vadd.f32 %v950, %v1669
  %v1766 = vadd.f32 %v955, %v1670
  %v1767 = vadd.f32 %v955, %v1671
  %v1768 = vadd.f32 %v960, %v1672
  %v1769 = vadd.f32 %v960, %v1673
  %v1770 = vadd.f32 %v965, %v1674
  %v1771 = vadd.f32 %v965, %v1675
  %v1772 = vadd.f32 %v970, %v1676
  %v1773 = vadd.f32 %v970, %v1677
  %v1774 = vadd.f32 %v975, %v1678
  %v1775 = vadd.f32 %v975, %v1679
  %v1776 = vadd.f32 %v980, %v1680
  %v1777 = vadd.f32 %v980, %v1681
  %1778 = vrot.lane.b32.xlu0 %v1586, 16
  %v1779 = vpop.permute.xlu0 %1778
  %1780 = vrot.lane.b32.xlu0 %v1588, 16
  %v1781 = vpop.permute.xlu0 %1780
  %1782 = vrot.lane.b32.xlu0 %v1590, 16
  %v1783 = vpop.permute.xlu0 %1782
  %1784 = vrot.lane.b32.xlu0 %v1592, 16
  %v1785 = vpop.permute.xlu0 %1784
  %1786 = vrot.lane.b32.xlu0 %v1594, 16
  %v1787 = vpop.permute.xlu0 %1786
  %1788 = vrot.lane.b32.xlu0 %v1596, 16
  %v1789 = vpop.permute.xlu0 %1788
  %1790 = vrot.lane.b32.xlu0 %v1598, 16
  %v1791 = vpop.permute.xlu0 %1790
  %1792 = vrot.lane.b32.xlu0 %v1600, 16
  %v1793 = vpop.permute.xlu0 %1792
  %1794 = vrot.lane.b32.xlu0 %v1587, 16
  %v1795 = vpop.permute.xlu0 %1794
  %1796 = vrot.lane.b32.xlu0 %v1589, 16
  %v1797 = vpop.permute.xlu0 %1796
  %1798 = vrot.lane.b32.xlu0 %v1591, 16
  %v1799 = vpop.permute.xlu0 %1798
  %1800 = vrot.lane.b32.xlu0 %v1593, 16
  %v1801 = vpop.permute.xlu0 %1800
  %1802 = vrot.lane.b32.xlu0 %v1595, 16
  %v1803 = vpop.permute.xlu0 %1802
  %1804 = vrot.lane.b32.xlu0 %v1597, 16
  %v1805 = vpop.permute.xlu0 %1804
  %1806 = vrot.lane.b32.xlu0 %v1599, 16
  %v1807 = vpop.permute.xlu0 %1806
  %1808 = vrot.lane.b32.xlu0 %v1601, 16
  %v1809 = vpop.permute.xlu0 %1808
  %v1810 = vsel %vm1030, %v1779, %v1795
  %v1811 = vsel %vm1030, %v1781, %v1797
  %v1812 = vsel %vm1030, %v1783, %v1799
  %v1813 = vsel %vm1030, %v1785, %v1801
  %v1814 = vsel %vm1030, %v1787, %v1803
  %v1815 = vsel %vm1030, %v1789, %v1805
  %v1816 = vsel %vm1030, %v1791, %v1807
  %v1817 = vsel %vm1030, %v1793, %v1809
  %v1818 = vsel %vm1030, %v1795, %v1779
  %v1819 = vsel %vm1030, %v1797, %v1781
  %v1820 = vsel %vm1030, %v1799, %v1783
  %v1821 = vsel %vm1030, %v1801, %v1785
  %v1822 = vsel %vm1030, %v1803, %v1787
  %v1823 = vsel %vm1030, %v1805, %v1789
  %v1824 = vsel %vm1030, %v1807, %v1791
  %v1825 = vsel %vm1030, %v1809, %v1793
  %v1826 = vmul.f32 %v1051, %v1818
  %v1827 = vmul.f32 %v1055, %v1810
  %v1828 = vmul.f32 %v1051, %v1819
  %v1829 = vmul.f32 %v1055, %v1811
  %v1830 = vmul.f32 %v1051, %v1820
  %v1831 = vmul.f32 %v1055, %v1812
  %v1832 = vmul.f32 %v1051, %v1821
  %v1833 = vmul.f32 %v1055, %v1813
  %v1834 = vmul.f32 %v1051, %v1822
  %v1835 = vmul.f32 %v1055, %v1814
  %v1836 = vmul.f32 %v1051, %v1823
  %v1837 = vmul.f32 %v1055, %v1815
  %v1838 = vmul.f32 %v1051, %v1824
  %v1839 = vmul.f32 %v1055, %v1816
  %v1840 = vmul.f32 %v1051, %v1825
  %v1841 = vmul.f32 %v1055, %v1817
  %v1842 = vadd.f32 %v1762, %v1826
  %v1843 = vadd.f32 %v1763, %v1827
  %v1844 = vadd.f32 %v1764, %v1828
  %v1845 = vadd.f32 %v1765, %v1829
  %v1846 = vadd.f32 %v1766, %v1830
  %v1847 = vadd.f32 %v1767, %v1831
  %v1848 = vadd.f32 %v1768, %v1832
  %v1849 = vadd.f32 %v1769, %v1833
  %v1850 = vadd.f32 %v1770, %v1834
  %v1851 = vadd.f32 %v1771, %v1835
  %v1852 = vadd.f32 %v1772, %v1836
  %v1853 = vadd.f32 %v1773, %v1837
  %v1854 = vadd.f32 %v1774, %v1838
  %v1855 = vadd.f32 %v1775, %v1839
  %v1856 = vadd.f32 %v1776, %v1840
  %v1857 = vadd.f32 %v1777, %v1841
  %1858 = vrot.lane.b32.xlu0 %v1746, 112
  %v1859 = vpop.permute.xlu0 %1858
  %1860 = vrot.lane.b32.xlu0 %v1748, 112
  %v1861 = vpop.permute.xlu0 %1860
  %1862 = vrot.lane.b32.xlu0 %v1750, 112
  %v1863 = vpop.permute.xlu0 %1862
  %1864 = vrot.lane.b32.xlu0 %v1752, 112
  %v1865 = vpop.permute.xlu0 %1864
  %1866 = vrot.lane.b32.xlu0 %v1754, 112
  %v1867 = vpop.permute.xlu0 %1866
  %1868 = vrot.lane.b32.xlu0 %v1756, 112
  %v1869 = vpop.permute.xlu0 %1868
  %1870 = vrot.lane.b32.xlu0 %v1758, 112
  %v1871 = vpop.permute.xlu0 %1870
  %1872 = vrot.lane.b32.xlu0 %v1760, 112
  %v1873 = vpop.permute.xlu0 %1872
  %1874 = vrot.lane.b32.xlu0 %v1747, 112
  %v1875 = vpop.permute.xlu0 %1874
  %1876 = vrot.lane.b32.xlu0 %v1749, 112
  %v1877 = vpop.permute.xlu0 %1876
  %1878 = vrot.lane.b32.xlu0 %v1751, 112
  %v1879 = vpop.permute.xlu0 %1878
  %1880 = vrot.lane.b32.xlu0 %v1753, 112
  %v1881 = vpop.permute.xlu0 %1880
  %1882 = vrot.lane.b32.xlu0 %v1755, 112
  %v1883 = vpop.permute.xlu0 %1882
  %1884 = vrot.lane.b32.xlu0 %v1757, 112
  %v1885 = vpop.permute.xlu0 %1884
  %1886 = vrot.lane.b32.xlu0 %v1759, 112
  %v1887 = vpop.permute.xlu0 %1886
  %1888 = vrot.lane.b32.xlu0 %v1761, 112
  %v1889 = vpop.permute.xlu0 %1888
  %v1890 = vsel %vm1122, %v1859, %v1875
  %v1891 = vsel %vm1122, %v1861, %v1877
  %v1892 = vsel %vm1122, %v1863, %v1879
  %v1893 = vsel %vm1122, %v1865, %v1881
  %v1894 = vsel %vm1122, %v1867, %v1883
  %v1895 = vsel %vm1122, %v1869, %v1885
  %v1896 = vsel %vm1122, %v1871, %v1887
  %v1897 = vsel %vm1122, %v1873, %v1889
  %v1898 = vsel %vm1122, %v1875, %v1859
  %v1899 = vsel %vm1122, %v1877, %v1861
  %v1900 = vsel %vm1122, %v1879, %v1863
  %v1901 = vsel %vm1122, %v1881, %v1865
  %v1902 = vsel %vm1122, %v1883, %v1867
  %v1903 = vsel %vm1122, %v1885, %v1869
  %v1904 = vsel %vm1122, %v1887, %v1871
  %v1905 = vsel %vm1122, %v1889, %v1873
  %v1906 = vmul.f32 %v1143, %v1890
  %v1907 = vmul.f32 %v1147, %v1898
  %v1908 = vmul.f32 %v1143, %v1891
  %v1909 = vmul.f32 %v1147, %v1899
  %v1910 = vmul.f32 %v1143, %v1892
  %v1911 = vmul.f32 %v1147, %v1900
  %v1912 = vmul.f32 %v1143, %v1893
  %v1913 = vmul.f32 %v1147, %v1901
  %v1914 = vmul.f32 %v1143, %v1894
  %v1915 = vmul.f32 %v1147, %v1902
  %v1916 = vmul.f32 %v1143, %v1895
  %v1917 = vmul.f32 %v1147, %v1903
  %v1918 = vmul.f32 %v1143, %v1896
  %v1919 = vmul.f32 %v1147, %v1904
  %v1920 = vmul.f32 %v1143, %v1897
  %v1921 = vmul.f32 %v1147, %v1905
  %v1922 = vadd.f32 %v1842, %v1906
  %v1923 = vadd.f32 %v1843, %v1907
  %v1924 = vadd.f32 %v1844, %v1908
  %v1925 = vadd.f32 %v1845, %v1909
  %v1926 = vadd.f32 %v1846, %v1910
  %v1927 = vadd.f32 %v1847, %v1911
  %v1928 = vadd.f32 %v1848, %v1912
  %v1929 = vadd.f32 %v1849, %v1913
  %v1930 = vadd.f32 %v1850, %v1914
  %v1931 = vadd.f32 %v1851, %v1915
  %v1932 = vadd.f32 %v1852, %v1916
  %v1933 = vadd.f32 %v1853, %v1917
  %v1934 = vadd.f32 %v1854, %v1918
  %v1935 = vadd.f32 %v1855, %v1919
  %v1936 = vadd.f32 %v1856, %v1920
  %v1937 = vadd.f32 %v1857, %v1921
  %v1938 = vmax.f32 %v1922, 0.0
  %v1939 = vmax.f32 %v1923, 0.0
  %v1940 = vmax.f32 %v1924, 0.0
  %v1941 = vmax.f32 %v1925, 0.0
  %v1942 = vmax.f32 %v1926, 0.0
  %v1943 = vmax.f32 %v1927, 0.0
  %v1944 = vmax.f32 %v1928, 0.0
  %v1945 = vmax.f32 %v1929, 0.0
  %v1946 = vmax.f32 %v1930, 0.0
  %v1947 = vmax.f32 %v1931, 0.0
  %v1948 = vmax.f32 %v1932, 0.0
  %v1949 = vmax.f32 %v1933, 0.0
  %v1950 = vmax.f32 %v1934, 0.0
  %v1951 = vmax.f32 %v1935, 0.0
  %v1952 = vmax.f32 %v1936, 0.0
  %v1953 = vmax.f32 %v1937, 0.0
  %v1954 = vmin.f32 %v1938, 6.0
  %v1955 = vmin.f32 %v1939, 6.0
  %v1956 = vmin.f32 %v1940, 6.0
  %v1957 = vmin.f32 %v1941, 6.0
  %v1958 = vmin.f32 %v1942, 6.0
  %v1959 = vmin.f32 %v1943, 6.0
  %v1960 = vmin.f32 %v1944, 6.0
  %v1961 = vmin.f32 %v1945, 6.0
  %v1962 = vmin.f32 %v1946, 6.0
  %v1963 = vmin.f32 %v1947, 6.0
  %v1964 = vmin.f32 %v1948, 6.0
  %v1965 = vmin.f32 %v1949, 6.0
  %v1966 = vmin.f32 %v1950, 6.0
  %v1967 = vmin.f32 %v1951, 6.0
  %v1968 = vmin.f32 %v1952, 6.0
  %v1969 = vmin.f32 %v1953, 6.0
  %v1970 = vpack.c.bf16 %v1956, %v1954
  %v1971 = vpack.c.bf16 %v1957, %v1955
  %v1972 = vpack.c.bf16 %v1960, %v1958
  %v1973 = vpack.c.bf16 %v1961, %v1959
  %v1974 = vpack.c.bf16 %v1964, %v1962
  %v1975 = vpack.c.bf16 %v1965, %v1963
  %v1976 = vpack.c.bf16 %v1968, %v1966
  %v1977 = vpack.c.bf16 %v1969, %v1967
  %1978 = vmatprep.subr.bf16.mxu0 %v1971
  %1979 = vmatpush1.bf16.msra.mxu0 %v1970
  %1980 = vmatprep.subr.bf16.mxu0 %v1973
  %1981 = vmatpush1.bf16.msra.mxu0 %v1972
  %1982 = vmatprep.subr.bf16.mxu0 %v1975
  %1983 = vmatpush1.bf16.msra.mxu0 %v1974
  %1984 = vmatprep.subr.bf16.mxu0 %v1977
  %1985 = vmatpush1.bf16.msra.mxu0 %v1976
  %1986 = vmatprep.subr.bf16.mxu0 0
  %1987 = vmatpush1.bf16.msra.mxu0 0
  %1988 = vmatprep.subr.bf16.mxu0 0
  %1989 = vmatpush1.bf16.msra.mxu0 0
  %1990 = vmatprep.subr.bf16.mxu0 0
  %1991 = vmatpush1.bf16.msra.mxu0 0
  %1992 = vmatprep.subr.bf16.mxu0 0
  %1993 = vmatpush1.bf16.msra.mxu0 0
  %1994 = vmatprep.subr.bf16.mxu0 0
  %1995 = vmatpush1.bf16.msra.mxu0 0
  %1996 = vmatprep.subr.bf16.mxu0 0
  %1997 = vmatpush1.bf16.msra.mxu0 0
  %1998 = vmatprep.subr.bf16.mxu0 0
  %1999 = vmatpush1.bf16.msra.mxu0 0
  %2000 = vmatprep.subr.bf16.mxu0 0
  %2001 = vmatpush1.bf16.msra.mxu0 0
  %2002 = vmatprep.subr.bf16.mxu0 0
  %2003 = vmatpush1.bf16.msra.mxu0 0
  %2004 = vmatprep.subr.bf16.mxu0 0
  %2005 = vmatpush1.bf16.msra.mxu0 0
  %2006 = vmatprep.subr.bf16.mxu0 0
  %2007 = vmatpush1.bf16.msra.mxu0 0
  %2008 = vmatprep.subr.bf16.mxu0 0
  %2009 = vmatpush1.bf16.msra.mxu0 0
  %2010 = vmatprep.mubr.bf16.mxu0 0
  %2011 = vmatmul.mubr.bf16.gmra.mrb[0].mxu0 %v1229
  %v2012 = vpop.f32.mrb[0].mxu0
  %v2013 = vadd.f32 0.0, %v2012
  %v2014 = vpop.f32.mrb[0].mxu0
  %v2015 = vadd.f32 0.0, %v2014
  %v2016 = vpop.f32.mrb[0].mxu0
  %v2017 = vadd.f32 0.0, %v2016
  %v2018 = vpop.f32.mrb[0].mxu0
  %v2019 = vadd.f32 0.0, %v2018
  %2020 = vdwg.mxu0
  %v2021 = vadd.f32 %v1283, %v2013
  %v2022 = vadd.f32 %v1284, %v2015
  %v2023 = vadd.f32 %v1285, %v2017
  %v2024 = vadd.f32 %v1286, %v2019
  %s2025 = scalar_lea.vmem %s7, 32
  %2026 = vst [vmem:[%s2025] sm:$0xff] %v2021
  %2027 = vst [vmem:[%s2025 + $0x8] sm:$0xff] %v2022
  %2028 = vst [vmem:[%s2025 + $0x10] sm:$0xff] %v2023
  %2029 = vst [vmem:[%s2025 + $0x18] sm:$0xff] %v2024
  // Predicated region
  $region30: #{inverted_block.1} parent=0 // pred_check
    _
  $region31: #{inverted_block.1} parent=0 // pred_check_branch
    %2031 = sbr.rel (0) target = $region33
  $region32: #{inverted_block.1} parent=0 // pred_region
    _
  $region33: #{inverted_block.1} parent=0 // pred_fallthru
    _
  // Predicated region
  $region34: #{inverted_block.1} parent=0 // pred_check
    _
  $region35: #{inverted_block.1} parent=0 // pred_check_branch
    %2033 = sbr.rel (0) target = $region37
  $region36: #{inverted_block.1} parent=0 // pred_region
    _
  $region37: #{inverted_block.1} parent=0 // pred_fallthru
    _

</llo_original>
